<compile_context>
chip_gen: v6e
topology: v6e:2x2x1
jax: 0.10.0
libtpu: 0.0.40
codegen_flags: <defaults>
</compile_context>

<pallas_src>
import functools

import jax
import jax.numpy as jnp
from jax import lax
from jax.experimental import pallas as pl
from jax.experimental.pallas import tpu as pltpu


def _carafe_kernel(feat_ref, mask_ref, out_ref, *, K, s, r, TH):
    """One (n, g, h-tile) step.

    feat_ref: (1, 1, Cg, Hp, Wp)   padded low-res features for this (n, g)   [resident]
    mask_ref: (1, 1, KK, THo, Wo)  reassembly weights, native layout, KK leading
    out_ref : (1, 1, Cg, THo, Wo)
    """
    Cg = feat_ref.shape[2]
    Hp = feat_ref.shape[3]
    Wp = feat_ref.shape[4]
    THo = mask_ref.shape[3]          # TH * s
    Wo = mask_ref.shape[4]           # W * s
    Hh = TH + 2 * r                  # low-res rows needed for this tile (incl. halo)

    # Low-res rows (with halo) for this tile, cast to f32 once.
    if Hh == Hp:
        feat = feat_ref[0, 0].astype(jnp.float32)                        # (Cg, Hh, Wp)
    else:
        row0 = pl.program_id(2) * TH
        if TH % 8 == 0:
            row0 = pl.multiple_of(row0, 8)
        feat = feat_ref[0, 0, :, pl.ds(row0, Hh), :].astype(jnp.float32)

    feat2d = feat.reshape(Cg * Hh, Wp)                                   # Cg folded into M
    mask = mask_ref[0, 0].astype(jnp.float32)                            # (KK, THo, Wo)

    # Column replication/shift matrix base:  Uw_kx[w, j] = 1  iff  w == kx + j // s.
    # Built with iota + compare only (no integer division); hoisted out of the tap loop.
    ww = lax.broadcasted_iota(jnp.int32, (Wp, Wo), 0)
    jj = lax.broadcasted_iota(jnp.int32, (Wp, Wo), 1)
    d_base = jj - ww * s                                                 # + kx*s per kx

    acc = jnp.zeros((Cg, THo, Wo), jnp.float32)

    for kx in range(K):
        d = d_base + kx * s
        Uw = ((d >= 0) & (d < s)).astype(jnp.float32)                    # (Wp, Wo)
        # Width upsample + kx column shift in one 2-D MXU matmul:
        #   fcol[c, h, j] = feat[c, h, kx + j // s]
        fcol = jnp.dot(feat2d, Uw,
                       preferred_element_type=jnp.float32).reshape(Cg, Hh, Wo)
        # Height replication by s: cheap sublane broadcast + reshape (no MXU).
        if s > 1:
            frow = jnp.broadcast_to(fcol[:, :, None, :],
                                    (Cg, Hh, s, Wo)).reshape(Cg, Hh * s, Wo)
        else:
            frow = fcol
        # K taps per kx: lane-aligned windows, only a small static sublane shift.
        for ky in range(K):
            tap = ky * K + kx
            fwin = frow[:, ky * s: ky * s + THo, :]                      # (Cg, THo, Wo)
            acc = acc + mask[tap][None, :, :] * fwin

    out_ref[0, 0] = acc.astype(out_ref.dtype)


def _vmem_limit_bytes():
    """~70% of the chip's per-core VMEM (capped), so v7x (64 MiB) keeps headroom."""
    cap = 128 * 1024 * 1024
    try:
        info = pltpu.get_tpu_info()
        cap = int(getattr(info, "vmem_capacity_bytes", cap) or cap)
    except Exception:
        pass
    return int(min(int(0.70 * cap), 100 * 1024 * 1024))


def _pick_tile_h(H, W, s, Cg, KK, r, feat_bytes, mask_bytes, budget_bytes):
    """Largest H tile (low-res rows) dividing H that fits the per-step VMEM budget.

    Accounts for the resident double-buffered feature block, the double-buffered
    mask/output blocks and the f32 in-kernel intermediates.  Prefers TH % 8 == 0 (or
    TH == H) so the feature row slice starts sublane-aligned.
    """
    Wo = W * s
    Wp = W + 2 * r
    Hp = H + 2 * r
    resident_feat = 2 * Cg * Hp * Wp * feat_bytes          # double-buffered by pipeline

    def cost(TH):
        THo = TH * s
        Hh = TH + 2 * r
        Hu = Hh * s
        blocks = 2 * (KK * THo * Wo * mask_bytes + Cg * THo * Wo * feat_bytes)
        interm = 4 * (Cg * Hh * Wp          # f32 feature slice
                      + KK * THo * Wo       # f32 mask
                      + Cg * THo * Wo       # accumulator
                      + Cg * Hu * Wo        # row-replicated tap source (frow)
                      + Cg * Hh * Wo        # column-shift matmul result (fcol)
                      + Cg * THo * Wo       # one materialized tap window (slack)
                      + Wp * Wo)            # replication matrix
        return int(1.15 * (resident_feat + blocks + interm))

    divs = [t for t in range(1, H + 1) if H % t == 0]
    tier1 = sorted([t for t in divs if t % 8 == 0 or t == H], reverse=True)
    tier2 = sorted([t for t in divs if (t * s) % 8 == 0 and t not in tier1], reverse=True)
    for cands in (tier1, tier2):
        for t in cands:
            if cost(t) <= budget_bytes:
                return t
    # Nothing fits the budget (e.g. the resident feature block alone is too large):
    # return the cheapest legal tile instead of silently returning an oversized one.
    # TODO(synk): add a feature-row-tiling fallback (manual halo DMA) for huge Cg*Hp*Wp.
    legal = tier1 + tier2
    return min(legal, key=cost) if legal else H


def carafe_pallas(features, masks, kernel_size, group_size, scale_factor, tile_h=None):
    """CARAFE-naive forward. features: (N,C,H,W), masks: (N,K*K*G,H*s,W*s) -> (N,C,H*s,W*s)."""
    N, C, H, W = features.shape
    K, G, s = kernel_size, group_size, scale_factor
    assert s >= 1
    assert masks.shape[1] == K * K * G
    assert masks.shape[2] == H * s and masks.shape[3] == W * s
    assert C % G == 0
    assert (K - 1) % 2 == 0 and K >= 1, "even kernel_size is unsupported (matches CUDA op)"

    Cg = C // G
    r = (K - 1) // 2
    KK = K * K
    Hp, Wp = H + 2 * r, W + 2 * r
    Ho, Wo = H * s, W * s

    vmem_limit = _vmem_limit_bytes()
    if tile_h is None:
        TH = _pick_tile_h(H, W, s, Cg, KK, r,
                          features.dtype.itemsize, masks.dtype.itemsize,
                          budget_bytes=int(0.8 * vmem_limit))
    else:
        TH = int(tile_h)
        assert H % TH == 0 and (TH == H or (TH * s) % 8 == 0), \
            "tile_h must divide H and give an output-row tile that is a multiple of 8"
    HT = H // TH
    THo = TH * s

    # ---- cheap glue: pad the (smallest) feature tensor; all other reshapes are free ----
    fpad = jnp.pad(features, ((0, 0), (0, 0), (r, r), (r, r)))            # (N, C, Hp, Wp)
    feat_k = fpad.reshape(N, G, Cg, Hp, Wp)                               # free reshape
    mask_k = masks.reshape(N, G, KK, Ho, Wo)                              # free reshape

    # TODO(synk): single-buffer the resident feature block (pipeline_mode) once its VMEM
    # cost matters on v7x; kept default-buffered here for maximum lowering portability.
    out_r = pl.pallas_call(
        functools.partial(_carafe_kernel, K=K, s=s, r=r, TH=TH),
        out_shape=jax.ShapeDtypeStruct((N, G, Cg, Ho, Wo), features.dtype),
        grid_spec=pltpu.PrefetchScalarGridSpec(
            num_scalar_prefetch=0,
            grid=(N, G, HT),
            in_specs=[
                # Padded feature block: index_map ignores the (innermost) h-tile axis,
                # so it is DMA'd once per (n, g) and revisited across tiles.
                pl.BlockSpec((1, 1, Cg, Hp, Wp), lambda n, g, t: (n, g, 0, 0, 0)),
                # Masks in native layout: KK on a leading axis, Wo lane-dense.
                pl.BlockSpec((1, 1, KK, THo, Wo), lambda n, g, t: (n, g, 0, t, 0)),
            ],
            out_specs=pl.BlockSpec((1, 1, Cg, THo, Wo), lambda n, g, t: (n, g, 0, t, 0)),
        ),
        compiler_params=pltpu.CompilerParams(
            # All axes write disjoint output blocks and carry no accumulator -> parallel
            # (lets v7x use both TensorCores even when N=1, G=1).
            dimension_semantics=("parallel", "parallel", "parallel"),
            vmem_limit_bytes=vmem_limit),
    )(feat_k, mask_k)

    return out_r.reshape(N, C, Ho, Wo)                                    # free reshape


def carafe_reference(features, masks, kernel_size, group_size, scale_factor):
    """Pure-JAX reference of the CARAFE-naive forward (NCHW)."""
    N, C, H, W = features.shape
    K, G, s = kernel_size, group_size, scale_factor
    Cg = C // G
    r = (K - 1) // 2
    Ho, Wo = H * s, W * s
    fpad = jnp.pad(features, ((0, 0), (0, 0), (r, r), (r, r)))
    m = masks.reshape(N, G, K * K, Ho, Wo)
    out = jnp.zeros((N, C, Ho, Wo), features.dtype)
    for ky in range(K):
        for kx in range(K):
            kidx = ky * K + kx
            fs = fpad[:, :, ky:ky + H, kx:kx + W]
            fu = jnp.repeat(jnp.repeat(fs, s, axis=2), s, axis=3)
            w = jnp.repeat(m[:, :, kidx], Cg, axis=1)
            out = out + fu * w
    return out


# TODO(synk): backward (CARAFENaiveFunction.backward) not implemented; forward only.

if __name__ == "__main__":
    # Config A: kernel_size=3, group_size=2, scale_factor=2 (no learned weights in CARAFE).
    kernel_size, group_size, scale_factor = 3, 2, 2
    N, C, H, W = 2, 8, 8, 8
    Ho, Wo = H * scale_factor, W * scale_factor

    key = jax.random.PRNGKey(0)
    k1, k2, k3, k4 = jax.random.split(key, 4)
    features = jax.random.normal(k1, (N, C, H, W), dtype=jnp.float32)
    mask_logits = jax.random.normal(
        k2, (N, group_size, kernel_size * kernel_size, Ho, Wo), dtype=jnp.float32)
    masks = jax.nn.softmax(mask_logits, axis=2).reshape(
        N, group_size * kernel_size * kernel_size, Ho, Wo)

    ref = carafe_reference(features, masks, kernel_size, group_size, scale_factor)

    # Default tiling (single H tile for this small shape).
    out = jax.block_until_ready(
        carafe_pallas(features, masks, kernel_size, group_size, scale_factor))
    assert out.shape == (N, C, Ho, Wo)
    assert jnp.allclose(out, ref, atol=1e-5, rtol=1e-5), "Pallas CARAFE mismatch (default tiling)"

    # Explicit multi-tile path (2 H-tiles with halo) to exercise the tiled code path.
    out_t = jax.block_until_ready(
        carafe_pallas(features, masks, kernel_size, group_size, scale_factor, tile_h=4))
    assert jnp.allclose(out_t, ref, atol=1e-5, rtol=1e-5), "Pallas CARAFE mismatch (tile_h=4)"

    # Config B: K=5, single group, scale_factor=1, rectangular spatial dims.
    K2, G2, s2 = 5, 1, 1
    N2, C2, H2, W2 = 1, 4, 8, 16
    f2 = jax.random.normal(k3, (N2, C2, H2, W2), dtype=jnp.float32)
    m2 = jax.nn.softmax(
        jax.random.normal(k4, (N2, G2, K2 * K2, H2 * s2, W2 * s2), dtype=jnp.float32),
        axis=2).reshape(N2, G2 * K2 * K2, H2 * s2, W2 * s2)
    out2 = jax.block_until_ready(carafe_pallas(f2, m2, K2, G2, s2))
    ref2 = carafe_reference(f2, m2, K2, G2, s2)
    assert jnp.allclose(out2, ref2, atol=1e-5, rtol=1e-5), "Pallas CARAFE mismatch (config B)"

    print("KERNEL_OK")
</pallas_src>

<mosaic_0001>
module attributes {stable_mosaic.version = 11 : i64} {
  func.func @_carafe_kernel(%arg0: i32, %arg1: i32, %arg2: i32, %arg3: memref<1x1x4x10x10xf32, #tpu.memory_space<vmem>>, %arg4: memref<1x1x9x16x16xf32, #tpu.memory_space<vmem>>, %arg5: memref<1x1x4x16x16xf32, #tpu.memory_space<vmem>>) attributes {dimension_semantics = [#tpu.dimension_semantics<parallel>, #tpu.dimension_semantics<parallel>, #tpu.dimension_semantics<parallel>], iteration_bounds = array<i64: 2, 2, 1>, scalar_prefetch = 0 : i64, scratch_operands = 0 : i64, tpu.core_type = #tpu.core_type<tc>, window_params = [{transform_indices = @transform_0, window_bounds = array<i64: 1, 1, 4, 10, 10>}, {transform_indices = @transform_1, window_bounds = array<i64: 1, 1, 9, 16, 16>}, {transform_indices = @transform_2, window_bounds = array<i64: 1, 1, 4, 16, 16>}]} {
    %c0 = arith.constant 0 : index
    %c0_0 = arith.constant 0 : index
    %c0_1 = arith.constant 0 : index
    %c0_2 = arith.constant 0 : index
    %c0_3 = arith.constant 0 : index
    %0 = vector.load %arg3[%c0, %c0_0, %c0_1, %c0_2, %c0_3] : memref<1x1x4x10x10xf32, #tpu.memory_space<vmem>>, vector<1x1x4x10x10xf32>
    %1 = vector.shape_cast %0 : vector<1x1x4x10x10xf32> to vector<4x10x10xf32>
    %2 = vector.shape_cast %1 : vector<4x10x10xf32> to vector<40x10xf32>
    %c0_4 = arith.constant 0 : index
    %c0_5 = arith.constant 0 : index
    %c0_6 = arith.constant 0 : index
    %c0_7 = arith.constant 0 : index
    %c0_8 = arith.constant 0 : index
    %3 = vector.load %arg4[%c0_4, %c0_5, %c0_6, %c0_7, %c0_8] : memref<1x1x9x16x16xf32, #tpu.memory_space<vmem>>, vector<1x1x9x16x16xf32>
    %4 = vector.shape_cast %3 : vector<1x1x9x16x16xf32> to vector<9x16x16xf32>
    %5 = tpu.iota {dimensions = array<i32: 0>} : vector<10x16xi32>
    %6 = tpu.iota {dimensions = array<i32: 1>} : vector<10x16xi32>
    %c2_i32 = arith.constant 2 : i32
    %7 = vector.broadcast %c2_i32 : i32 to vector<10x16xi32>
    %8 = arith.muli %5, %7 : vector<10x16xi32>
    %9 = arith.subi %6, %8 : vector<10x16xi32>
    %cst = arith.constant 0.000000e+00 : f32
    %10 = vector.broadcast %cst : f32 to vector<4x16x16xf32>
    %c0_i32 = arith.constant 0 : i32
    %11 = vector.broadcast %c0_i32 : i32 to vector<10x16xi32>
    %12 = arith.addi %9, %11 : vector<10x16xi32>
    %c0_i32_9 = arith.constant 0 : i32
    %13 = vector.broadcast %c0_i32_9 : i32 to vector<10x16xi32>
    %14 = arith.cmpi sge, %12, %13 : vector<10x16xi32>
    %c2_i32_10 = arith.constant 2 : i32
    %15 = vector.broadcast %c2_i32_10 : i32 to vector<10x16xi32>
    %16 = arith.cmpi slt, %12, %15 : vector<10x16xi32>
    %17 = arith.andi %14, %16 : vector<10x16xi1>
    %18 = arith.extui %17 : vector<10x16xi1> to vector<10x16xi32>
    %19 = arith.sitofp %18 : vector<10x16xi32> to vector<10x16xf32>
    %cst_11 = arith.constant dense<0.000000e+00> : vector<40x16xf32>
    %20 = tpu.matmul %2, %19, %cst_11 {dimension_numbers = #tpu.dot_dimension_numbers<[1], [0], [0], [1], [0, 0, 1, 1], [], []>} : vector<40x10xf32>, vector<10x16xf32>, vector<40x16xf32> -> vector<40x16xf32>
    %21 = vector.shape_cast %20 : vector<40x16xf32> to vector<4x10x16xf32>
    %22 = vector.shape_cast %21 : vector<4x10x16xf32> to vector<4x10x1x16xf32>
    %23 = vector.shape_cast %22 : vector<4x10x1x16xf32> to vector<4x10x1x16xf32>
    %24 = vector.broadcast %23 : vector<4x10x1x16xf32> to vector<4x10x2x16xf32>
    %25 = vector.shape_cast %24 : vector<4x10x2x16xf32> to vector<4x20x16xf32>
    %26 = vector.extract_strided_slice %25 {offsets = [0, 0, 0], sizes = [4, 16, 16], strides = [1, 1, 1]} : vector<4x20x16xf32> to vector<4x16x16xf32>
    %27 = vector.extract_strided_slice %4 {offsets = [0, 0, 0], sizes = [1, 16, 16], strides = [1, 1, 1]} : vector<9x16x16xf32> to vector<1x16x16xf32>
    %28 = vector.shape_cast %27 : vector<1x16x16xf32> to vector<16x16xf32>
    %29 = vector.shape_cast %28 : vector<16x16xf32> to vector<1x16x16xf32>
    %30 = vector.broadcast %29 : vector<1x16x16xf32> to vector<4x16x16xf32>
    %31 = arith.mulf %30, %26 : vector<4x16x16xf32>
    %32 = arith.addf %10, %31 : vector<4x16x16xf32>
    %33 = vector.extract_strided_slice %25 {offsets = [0, 2, 0], sizes = [4, 16, 16], strides = [1, 1, 1]} : vector<4x20x16xf32> to vector<4x16x16xf32>
    %34 = vector.extract_strided_slice %4 {offsets = [3, 0, 0], sizes = [1, 16, 16], strides = [1, 1, 1]} : vector<9x16x16xf32> to vector<1x16x16xf32>
    %35 = vector.shape_cast %34 : vector<1x16x16xf32> to vector<16x16xf32>
    %36 = vector.shape_cast %35 : vector<16x16xf32> to vector<1x16x16xf32>
    %37 = vector.broadcast %36 : vector<1x16x16xf32> to vector<4x16x16xf32>
    %38 = arith.mulf %37, %33 : vector<4x16x16xf32>
    %39 = arith.addf %32, %38 : vector<4x16x16xf32>
    %40 = vector.extract_strided_slice %25 {offsets = [0, 4, 0], sizes = [4, 16, 16], strides = [1, 1, 1]} : vector<4x20x16xf32> to vector<4x16x16xf32>
    %41 = vector.extract_strided_slice %4 {offsets = [6, 0, 0], sizes = [1, 16, 16], strides = [1, 1, 1]} : vector<9x16x16xf32> to vector<1x16x16xf32>
    %42 = vector.shape_cast %41 : vector<1x16x16xf32> to vector<16x16xf32>
    %43 = vector.shape_cast %42 : vector<16x16xf32> to vector<1x16x16xf32>
    %44 = vector.broadcast %43 : vector<1x16x16xf32> to vector<4x16x16xf32>
    %45 = arith.mulf %44, %40 : vector<4x16x16xf32>
    %46 = arith.addf %39, %45 : vector<4x16x16xf32>
    %c2_i32_12 = arith.constant 2 : i32
    %47 = vector.broadcast %c2_i32_12 : i32 to vector<10x16xi32>
    %48 = arith.addi %9, %47 : vector<10x16xi32>
    %c0_i32_13 = arith.constant 0 : i32
    %49 = vector.broadcast %c0_i32_13 : i32 to vector<10x16xi32>
    %50 = arith.cmpi sge, %48, %49 : vector<10x16xi32>
    %c2_i32_14 = arith.constant 2 : i32
    %51 = vector.broadcast %c2_i32_14 : i32 to vector<10x16xi32>
    %52 = arith.cmpi slt, %48, %51 : vector<10x16xi32>
    %53 = arith.andi %50, %52 : vector<10x16xi1>
    %54 = arith.extui %53 : vector<10x16xi1> to vector<10x16xi32>
    %55 = arith.sitofp %54 : vector<10x16xi32> to vector<10x16xf32>
    %cst_15 = arith.constant dense<0.000000e+00> : vector<40x16xf32>
    %56 = tpu.matmul %2, %55, %cst_15 {dimension_numbers = #tpu.dot_dimension_numbers<[1], [0], [0], [1], [0, 0, 1, 1], [], []>} : vector<40x10xf32>, vector<10x16xf32>, vector<40x16xf32> -> vector<40x16xf32>
    %57 = vector.shape_cast %56 : vector<40x16xf32> to vector<4x10x16xf32>
    %58 = vector.shape_cast %57 : vector<4x10x16xf32> to vector<4x10x1x16xf32>
    %59 = vector.shape_cast %58 : vector<4x10x1x16xf32> to vector<4x10x1x16xf32>
    %60 = vector.broadcast %59 : vector<4x10x1x16xf32> to vector<4x10x2x16xf32>
    %61 = vector.shape_cast %60 : vector<4x10x2x16xf32> to vector<4x20x16xf32>
    %62 = vector.extract_strided_slice %61 {offsets = [0, 0, 0], sizes = [4, 16, 16], strides = [1, 1, 1]} : vector<4x20x16xf32> to vector<4x16x16xf32>
    %63 = vector.extract_strided_slice %4 {offsets = [1, 0, 0], sizes = [1, 16, 16], strides = [1, 1, 1]} : vector<9x16x16xf32> to vector<1x16x16xf32>
    %64 = vector.shape_cast %63 : vector<1x16x16xf32> to vector<16x16xf32>
    %65 = vector.shape_cast %64 : vector<16x16xf32> to vector<1x16x16xf32>
    %66 = vector.broadcast %65 : vector<1x16x16xf32> to vector<4x16x16xf32>
    %67 = arith.mulf %66, %62 : vector<4x16x16xf32>
    %68 = arith.addf %46, %67 : vector<4x16x16xf32>
    %69 = vector.extract_strided_slice %61 {offsets = [0, 2, 0], sizes = [4, 16, 16], strides = [1, 1, 1]} : vector<4x20x16xf32> to vector<4x16x16xf32>
    %70 = vector.extract_strided_slice %4 {offsets = [4, 0, 0], sizes = [1, 16, 16], strides = [1, 1, 1]} : vector<9x16x16xf32> to vector<1x16x16xf32>
    %71 = vector.shape_cast %70 : vector<1x16x16xf32> to vector<16x16xf32>
    %72 = vector.shape_cast %71 : vector<16x16xf32> to vector<1x16x16xf32>
    %73 = vector.broadcast %72 : vector<1x16x16xf32> to vector<4x16x16xf32>
    %74 = arith.mulf %73, %69 : vector<4x16x16xf32>
    %75 = arith.addf %68, %74 : vector<4x16x16xf32>
    %76 = vector.extract_strided_slice %61 {offsets = [0, 4, 0], sizes = [4, 16, 16], strides = [1, 1, 1]} : vector<4x20x16xf32> to vector<4x16x16xf32>
    %77 = vector.extract_strided_slice %4 {offsets = [7, 0, 0], sizes = [1, 16, 16], strides = [1, 1, 1]} : vector<9x16x16xf32> to vector<1x16x16xf32>
    %78 = vector.shape_cast %77 : vector<1x16x16xf32> to vector<16x16xf32>
    %79 = vector.shape_cast %78 : vector<16x16xf32> to vector<1x16x16xf32>
    %80 = vector.broadcast %79 : vector<1x16x16xf32> to vector<4x16x16xf32>
    %81 = arith.mulf %80, %76 : vector<4x16x16xf32>
    %82 = arith.addf %75, %81 : vector<4x16x16xf32>
    %c4_i32 = arith.constant 4 : i32
    %83 = vector.broadcast %c4_i32 : i32 to vector<10x16xi32>
    %84 = arith.addi %9, %83 : vector<10x16xi32>
    %c0_i32_16 = arith.constant 0 : i32
    %85 = vector.broadcast %c0_i32_16 : i32 to vector<10x16xi32>
    %86 = arith.cmpi sge, %84, %85 : vector<10x16xi32>
    %c2_i32_17 = arith.constant 2 : i32
    %87 = vector.broadcast %c2_i32_17 : i32 to vector<10x16xi32>
    %88 = arith.cmpi slt, %84, %87 : vector<10x16xi32>
    %89 = arith.andi %86, %88 : vector<10x16xi1>
    %90 = arith.extui %89 : vector<10x16xi1> to vector<10x16xi32>
    %91 = arith.sitofp %90 : vector<10x16xi32> to vector<10x16xf32>
    %cst_18 = arith.constant dense<0.000000e+00> : vector<40x16xf32>
    %92 = tpu.matmul %2, %91, %cst_18 {dimension_numbers = #tpu.dot_dimension_numbers<[1], [0], [0], [1], [0, 0, 1, 1], [], []>} : vector<40x10xf32>, vector<10x16xf32>, vector<40x16xf32> -> vector<40x16xf32>
    %93 = vector.shape_cast %92 : vector<40x16xf32> to vector<4x10x16xf32>
    %94 = vector.shape_cast %93 : vector<4x10x16xf32> to vector<4x10x1x16xf32>
    %95 = vector.shape_cast %94 : vector<4x10x1x16xf32> to vector<4x10x1x16xf32>
    %96 = vector.broadcast %95 : vector<4x10x1x16xf32> to vector<4x10x2x16xf32>
    %97 = vector.shape_cast %96 : vector<4x10x2x16xf32> to vector<4x20x16xf32>
    %98 = vector.extract_strided_slice %97 {offsets = [0, 0, 0], sizes = [4, 16, 16], strides = [1, 1, 1]} : vector<4x20x16xf32> to vector<4x16x16xf32>
    %99 = vector.extract_strided_slice %4 {offsets = [2, 0, 0], sizes = [1, 16, 16], strides = [1, 1, 1]} : vector<9x16x16xf32> to vector<1x16x16xf32>
    %100 = vector.shape_cast %99 : vector<1x16x16xf32> to vector<16x16xf32>
    %101 = vector.shape_cast %100 : vector<16x16xf32> to vector<1x16x16xf32>
    %102 = vector.broadcast %101 : vector<1x16x16xf32> to vector<4x16x16xf32>
    %103 = arith.mulf %102, %98 : vector<4x16x16xf32>
    %104 = arith.addf %82, %103 : vector<4x16x16xf32>
    %105 = vector.extract_strided_slice %97 {offsets = [0, 2, 0], sizes = [4, 16, 16], strides = [1, 1, 1]} : vector<4x20x16xf32> to vector<4x16x16xf32>
    %106 = vector.extract_strided_slice %4 {offsets = [5, 0, 0], sizes = [1, 16, 16], strides = [1, 1, 1]} : vector<9x16x16xf32> to vector<1x16x16xf32>
    %107 = vector.shape_cast %106 : vector<1x16x16xf32> to vector<16x16xf32>
    %108 = vector.shape_cast %107 : vector<16x16xf32> to vector<1x16x16xf32>
    %109 = vector.broadcast %108 : vector<1x16x16xf32> to vector<4x16x16xf32>
    %110 = arith.mulf %109, %105 : vector<4x16x16xf32>
    %111 = arith.addf %104, %110 : vector<4x16x16xf32>
    %112 = vector.extract_strided_slice %97 {offsets = [0, 4, 0], sizes = [4, 16, 16], strides = [1, 1, 1]} : vector<4x20x16xf32> to vector<4x16x16xf32>
    %113 = vector.extract_strided_slice %4 {offsets = [8, 0, 0], sizes = [1, 16, 16], strides = [1, 1, 1]} : vector<9x16x16xf32> to vector<1x16x16xf32>
    %114 = vector.shape_cast %113 : vector<1x16x16xf32> to vector<16x16xf32>
    %115 = vector.shape_cast %114 : vector<16x16xf32> to vector<1x16x16xf32>
    %116 = vector.broadcast %115 : vector<1x16x16xf32> to vector<4x16x16xf32>
    %117 = arith.mulf %116, %112 : vector<4x16x16xf32>
    %118 = arith.addf %111, %117 : vector<4x16x16xf32>
    %c0_19 = arith.constant 0 : index
    %c0_20 = arith.constant 0 : index
    %c0_21 = arith.constant 0 : index
    %c0_22 = arith.constant 0 : index
    %c0_23 = arith.constant 0 : index
    %119 = vector.load %arg5[%c0_19, %c0_20, %c0_21, %c0_22, %c0_23] : memref<1x1x4x16x16xf32, #tpu.memory_space<vmem>>, vector<1x1x4x16x16xf32>
    %120 = vector.shape_cast %119 : vector<1x1x4x16x16xf32> to vector<4x16x16xf32>
    %121 = vector.shape_cast %118 : vector<4x16x16xf32> to vector<1x1x4x16x16xf32>
    tpu.vector_store %arg5[%c0_19, %c0_20, %c0_21, %c0_22, %c0_23], %121 {strides = array<i32>} : memref<1x1x4x16x16xf32, #tpu.memory_space<vmem>>, vector<1x1x4x16x16xf32>,
    return
  }
  func.func @transform_0(%arg0: i32, %arg1: i32, %arg2: i32) -> (i32, i32, i32, i32, i32) {
    %c0_i32 = arith.constant 0 : i32
    %c0_i32_0 = arith.constant 0 : i32
    %c0_i32_1 = arith.constant 0 : i32
    %c0_i32_2 = arith.constant 0 : i32
    return %arg0, %arg1, %c0_i32, %c0_i32_0, %c0_i32_1 : i32, i32, i32, i32, i32
  }
  func.func @transform_1(%arg0: i32, %arg1: i32, %arg2: i32) -> (i32, i32, i32, i32, i32) {
    %c0_i32 = arith.constant 0 : i32
    %c0_i32_0 = arith.constant 0 : i32
    %c0_i32_1 = arith.constant 0 : i32
    return %arg0, %arg1, %c0_i32, %arg2, %c0_i32_0 : i32, i32, i32, i32, i32
  }
  func.func @transform_2(%arg0: i32, %arg1: i32, %arg2: i32) -> (i32, i32, i32, i32, i32) {
    %c0_i32 = arith.constant 0 : i32
    %c0_i32_0 = arith.constant 0 : i32
    %c0_i32_1 = arith.constant 0 : i32
    return %arg0, %arg1, %c0_i32, %arg2, %c0_i32_0 : i32, i32, i32, i32, i32
  }
}

</mosaic_0001>

<llo_original>
// kernel: tpu_custom_call.1
$region0: #{tpu_custom_call.1}
  #allocation0 [shape = 'u32[]', space=smem, size = 0x4, offset = 0x4, fixed_abs, tag = 'smem constant byte address 0x4 - core index']
  #allocation1 [shape = 'u32[144,128]{1,0:T(1,128)}', space=vmem, size = 0x12000, scoped, tag = 'internal scratch']
  %s0 = inlined_call_operand.vmem [shape: f32[2,2,4,10,10], index: 0, kind: input, shape index: {}]
  %s1 = inlined_call_operand.hbm [shape: f32[2,2,9,16,16], index: 1, kind: input, shape index: {}]
  %s2 = inlined_call_operand.hbm [shape: f32[2,2,4,16,16], index: 2, kind: output, shape index: {}]
  %s3 = sld [smem:[#allocation0]]
  $region45: #{tpu_custom_call.1} parent=0
    _
  %s5 = ssub.s32 1, %s3
  %s6 = scalar_select 0, %s5, %s3
  $region1: #{tpu_custom_call.1} parent=0
    #allocation2 [shape = 'u8[147456]{0}', space=vmem, size = 0x24000, scoped, tag = 'input window, operand 1']
    #allocation3 [shape = 's32[2]{0}', space=sflag, size = 0x8, scoped, tag = 'scoped memory for tpu_custom_call.1']
    #allocation4 [shape = 's32[2]{0}', space=sflag, size = 0x8, scoped, tag = 'scoped memory for tpu_custom_call.1']
    #allocation5 [shape = 'u8[65536]{0}', space=vmem, size = 0x10000, scoped, tag = 'output window, operand 0']
    %7 = vsyncpa [#allocation3], 0
    %s8 = scalar_lea.sflag [#allocation3], 1
    %9 = vsyncpa %s8, 0
    %10 = vsyncpa [#allocation4], 0
    %s11 = scalar_lea.sflag [#allocation4], 1
    %12 = vsyncpa %s11, 0
    loop: start=0, step=1, limit=6
    $region2: #{tpu_custom_call.1} parent=1 // loop_pre_header
      _
    $region3: #{tpu_custom_call.1} parent=1 // loop_header
      %s14 = sphi 0, %s18
      %p15 = scmp.ge.s32.totalorder %s14, 6
      %s21 = sphi 0, %s40
      %s22 = sphi 0, %s36
      %s23 = sphi 0, %s32
      %s24 = sphi 0, %s21
      %s25 = sphi 0, %s22
      %s26 = sphi 0, %s23
      %s27 = sphi 0, %s24
      %s28 = sphi 0, %s25
      %s29 = sphi 0, %s26
      %s45 = sphi 0, %s47
      %s48 = sphi 0, %s45
      %s49 = sphi 0, %s48
      %s65 = sphi 0, %s49
      %s75 = sphi 0, %s77
      %s78 = sphi 0, %s75
      %s79 = sphi 0, %s78
      %s95 = sphi 0, %s79
      %s105 = sphi 0, %s107
      %s108 = sphi 0, %s105
      %s109 = sphi 0, %s108
      %s125 = sphi 0, %s109
    $region4: #{tpu_custom_call.1} parent=1 // loop_header_branch
      %17 = sbr.rel (%p15) target = $region8
    $region5: #{tpu_custom_call.1} parent=1 // loop_body
      %s19 = ssub.s32 %s14, 1
      %s20 = ssub.s32 %s14, 2
      %s30 = sadd.s32 1, %s23
      %p31 = scmp.ge.s32.totalorder %s30, 1
      %s32 = scalar_select %p31, 0, %s30
      %s33 = sadd.s32 1, %s22
      %s34 = scalar_select %p31, %s33, %s22
      %p35 = scmp.ge.s32.totalorder %s34, 2
      %s36 = scalar_select %p35, 0, %s34
      %s37 = sadd.s32 1, %s21
      %s38 = scalar_select %p35, %s37, %s21
      %p39 = scmp.ge.s32.totalorder %s38, 2
      %s40 = scalar_select %p39, 0, %s38
      %s41 = ssub.s32 %s21, %s40
      %s42 = ssub.s32 %s22, %s36
      %s43 = sor.u32 %s41, %s42
      %p44 = scmp.eq.s32.totalorder %s43, 0
      %s46 = sadd.s32 %s45, 1
      %s47 = scalar_select %p44, %s45, %s46
      %p50 = pneg %p44
      %p51 = scmp.eq.s32.totalorder %s14, 3
      %p52 = por %p50, %p51
      %p53 = scmp.ne.s32.totalorder %s45, %s48
      %p54 = scmp.eq.s32.totalorder %s14, 0
      %p55 = por %p53, %p54
      %p56 = scmp.ne.s32.totalorder %s45, %s48
      %p57 = scmp.eq.s32.totalorder %s19, 3
      %p58 = por %p56, %p57
      %p59 = scmp.ne.s32.totalorder %s48, %s49
      %p60 = scmp.eq.s32.totalorder %s19, 0
      %p61 = por %p59, %p60
      %p62 = scmp.ne.s32.totalorder %s48, %s49
      %p63 = scmp.eq.s32.totalorder %s20, 3
      %p64 = por %p62, %p63
      %p66 = scmp.ne.s32.totalorder %s49, %s65
      %p67 = scmp.eq.s32.totalorder %s20, 0
      %p68 = por %p66, %p67
      %s69 = ssub.s32 %s21, %s40
      %s70 = ssub.s32 %s22, %s36
      %s71 = sor.u32 %s69, %s70
      %s72 = ssub.s32 %s23, %s32
      %s73 = sor.u32 %s71, %s72
      %p74 = scmp.eq.s32.totalorder %s73, 0
      %s76 = sadd.s32 %s75, 1
      %s77 = scalar_select %p74, %s75, %s76
      %p80 = pneg %p74
      %p81 = scmp.eq.s32.totalorder %s14, 3
      %p82 = por %p80, %p81
      %p83 = scmp.ne.s32.totalorder %s75, %s78
      %p84 = scmp.eq.s32.totalorder %s14, 0
      %p85 = por %p83, %p84
      %p86 = scmp.ne.s32.totalorder %s75, %s78
      %p87 = scmp.eq.s32.totalorder %s19, 3
      %p88 = por %p86, %p87
      %p89 = scmp.ne.s32.totalorder %s78, %s79
      %p90 = scmp.eq.s32.totalorder %s19, 0
      %p91 = por %p89, %p90
      %p92 = scmp.ne.s32.totalorder %s78, %s79
      %p93 = scmp.eq.s32.totalorder %s20, 3
      %p94 = por %p92, %p93
      %p96 = scmp.ne.s32.totalorder %s79, %s95
      %p97 = scmp.eq.s32.totalorder %s20, 0
      %p98 = por %p96, %p97
      %s99 = ssub.s32 %s21, %s40
      %s100 = ssub.s32 %s22, %s36
      %s101 = sor.u32 %s99, %s100
      %s102 = ssub.s32 %s23, %s32
      %s103 = sor.u32 %s101, %s102
      %p104 = scmp.eq.s32.totalorder %s103, 0
      %s106 = sadd.s32 %s105, 1
      %s107 = scalar_select %p104, %s105, %s106
      %p110 = pneg %p104
      %p111 = scmp.eq.s32.totalorder %s14, 3
      %p112 = por %p110, %p111
      %p113 = scmp.ne.s32.totalorder %s105, %s108
      %p114 = scmp.eq.s32.totalorder %s14, 0
      %p115 = por %p113, %p114
      %p116 = scmp.ne.s32.totalorder %s105, %s108
      %p117 = scmp.eq.s32.totalorder %s19, 3
      %p118 = por %p116, %p117
      %p119 = scmp.ne.s32.totalorder %s108, %s109
      %p120 = scmp.eq.s32.totalorder %s19, 0
      %p121 = por %p119, %p120
      %p122 = scmp.ne.s32.totalorder %s108, %s109
      %p123 = scmp.eq.s32.totalorder %s20, 3
      %p124 = por %p122, %p123
      %p126 = scmp.ne.s32.totalorder %s109, %s125
      %p127 = scmp.eq.s32.totalorder %s20, 0
      %p128 = por %p126, %p127
      %p129 = scmp.le.s32.totalorder 1, %s14
      %p130 = scmp.lt.s32.totalorder %s14, 5
      %p131 = pnand %p129, %p130
      %p132 = pneg %p131
      // Predicated region
      $region9: #{tpu_custom_call.1} parent=5 // pred_check
        _
      $region10: #{tpu_custom_call.1} parent=5 // pred_check_branch
        %134 = sbr.rel (%p131) target = $region12
      $region11: #{tpu_custom_call.1} parent=5 // pred_region
        %s135 = ssub.s32 %s14, 1
      $region12: #{tpu_custom_call.1} parent=5 // pred_fallthru
        _
      %p136 = scmp.lt.s32.totalorder %s14, 4
      // Predicated region
      $region13: #{tpu_custom_call.1} parent=5 // pred_check
        %p137 = pneg %p136
      $region14: #{tpu_custom_call.1} parent=5 // pred_check_branch
        %139 = sbr.rel (%p137) target = $region16
      $region15: #{tpu_custom_call.1} parent=5 // pred_region
        // Predicated region
        $region17: #{tpu_custom_call.1} parent=15 // pred_check
          %p140 = pneg %p55
        $region18: #{tpu_custom_call.1} parent=15 // pred_check_branch
          %142 = sbr.rel (%p140) target = $region20
        $region19: #{tpu_custom_call.1} parent=15 // pred_region
          %p143 = scmp.lt.s32.totalorder %s21, 1
          %s144 = scalar_select %p143, %s21, 1
          %p145 = scmp.lt.s32.totalorder %s22, 1
          %s146 = scalar_select %p145, %s22, 1
          %s147 = smul.addr %s146, 8
          %s148 = smul.addr %s144, 16
          %s149 = sadd.s32 %s147, %s148
          %s150 = smul.addr %s149, 8
          %s151 = scalar_lea.vmem %s0, %s150
        $region20: #{tpu_custom_call.1} parent=15 // pred_fallthru
          _
        // Predicated region
        $region21: #{tpu_custom_call.1} parent=15 // pred_check
          %p152 = pneg %p85
        $region22: #{tpu_custom_call.1} parent=15 // pred_check_branch
          %154 = sbr.rel (%p152) target = $region24
        $region23: #{tpu_custom_call.1} parent=15 // pred_region
          %s155 = sand.u32 %s75, 1
          %s156 = scalar_lea.sflag [#allocation3], %s155
          %s157 = sand.u32 %s75, 1
          %s158 = smul.addr %s157, 144
          %s159 = scalar_lea.vmem [#allocation2], %s158
          %s160 = smul.u32 2, %s23
          %s162 = ssub.s32 2304, 2304
          %163 = vsyncadd %s156, %s162
          %s164 = smul.addr %s22, 18
          %s165 = sadd.s32 %s160, %s164
          %s166 = smul.addr %s21, 36
          %s167 = sadd.s32 %s165, %s166
          %s168 = smul.addr %s167, 128
          %s169 = scalar_lea.hbm %s1, %s168
          %s170 = sshll.u32 %s159, 4
          %s171 = int_to_ptr.vmem [resolvable:$true] %s170
          %176 = dma.hbm_to_vmem [thread:$0]  %s169, 2304, %s171, %s156, 128, 128, 8
        $region24: #{tpu_custom_call.1} parent=15 // pred_fallthru
          _
      $region16: #{tpu_custom_call.1} parent=5 // pred_fallthru
        _
      %p177 = scmp.le.s32.totalorder 1, %s14
      %p178 = scmp.lt.s32.totalorder %s14, 5
      %p179 = pnand %p177, %p178
      %p180 = pneg %p179
      // Predicated region
      $region25: #{tpu_custom_call.1} parent=5 // pred_check
        _
      $region26: #{tpu_custom_call.1} parent=5 // pred_check_branch
        %182 = sbr.rel (%p179) target = $region28
      $region27: #{tpu_custom_call.1} parent=5 // pred_region
        %s183 = ssub.s32 %s14, 1
        %s184 = sand.u32 %s78, 1
        %s185 = scalar_lea.sflag [#allocation3], %s184
        %s186 = sand.u32 %s78, 1
        %s187 = smul.addr %s186, 144
        %s188 = scalar_lea.vmem [#allocation2], %s187
        // Predicated region
        $region29: #{tpu_custom_call.1} parent=27 // pred_check
          %p189 = pneg %p91
        $region30: #{tpu_custom_call.1} parent=27 // pred_check_branch
          %191 = sbr.rel (%p189) target = $region32
        $region31: #{tpu_custom_call.1} parent=27 // pred_region
          %192 = dma.done %s185, 2304
        $region32: #{tpu_custom_call.1} parent=27 // pred_fallthru
          _
        %p193 = scmp.lt.s32.totalorder %s24, 1
        %s194 = scalar_select %p193, %s24, 1
        %p195 = scmp.lt.s32.totalorder %s25, 1
        %s196 = scalar_select %p195, %s25, 1
        %s197 = smul.addr %s196, 8
        %s198 = smul.addr %s194, 16
        %s199 = sadd.s32 %s197, %s198
        %s200 = smul.addr %s199, 8
        %s201 = scalar_lea.vmem %s0, %s200
        %p202 = pneg %p61
        %p203 = pneg %p58
        %s204 = sand.u32 %s78, 1
        %s205 = scalar_lea.sflag [#allocation3], %s204
        %s206 = sand.u32 %s78, 1
        %s207 = smul.addr %s206, 144
        %s208 = scalar_lea.vmem [#allocation2], %s207
        %p209 = pneg %p91
        %p210 = pneg %p88
        %p211 = pneg %p121
        %p212 = pneg %p118
        %s213 = sand.u32 %s108, 1
        %s214 = scalar_lea.sflag [#allocation4], %s213
        %s215 = sand.u32 %s108, 1
        %s216 = smul.addr %s215, 64
        %s217 = scalar_lea.vmem [#allocation5], %s216
        %p218 = scmp.lt.s32.totalorder %s24, 1
        %s219 = scalar_select %p218, %s24, 1
        %p220 = scmp.lt.s32.totalorder %s25, 1
        %s221 = scalar_select %p220, %s25, 1
        %s222 = smul.addr %s221, 8
        %s223 = smul.addr %s219, 16
        %s224 = sadd.s32 %s222, %s223
        %s225 = smul.addr %s224, 8
        %s226 = scalar_lea.vmem %s0, %s225
        %s227 = smul.u32 2, %s26
        %s228 = smul.u32 2, %s26
        %v229 = vld [vmem:[%s226] sm:$0xff]
        %v230 = vld [vmem:[%s226 + $0x8] sm:$0x3]
        %v231 = vld [vmem:[%s226 + $0x10] sm:$0xff]
        %v232 = vld [vmem:[%s226 + $0x18] sm:$0x3]
        %v233 = vld [vmem:[%s226 + $0x20] sm:$0xff]
        %v234 = vld [vmem:[%s226 + $0x28] sm:$0x3]
        %v235 = vld [vmem:[%s226 + $0x30] sm:$0xff]
        %v236 = vld [vmem:[%s226 + $0x38] sm:$0x3]
        %v245 = vcombine.high %v229, %v229
        %v247 = vunpack.c.l.s4 1983009808
        %v248 = vunpack.c.0.s8 %v247
        %v249 = vlaneseq
        %v250 = vshrl.u32 %v249, 7
        %v251 = vsub.s32 %v248, %v250
        %v252 = vrot.slane %v229, %v251
        %v254 = vunpack.c.l.s4 1983009808
        %v255 = vunpack.c.0.s8 %v254
        %v256 = vlaneseq
        %v257 = vshrl.u32 %v256, 7
        %v258 = vsub.s32 %v255, %v257
        %v259 = vrot.slane %v245, %v258
        %v260 = vcombine.high %v252, %v252
        %v261 = vcombine.high %v259, %v259
        %v263 = vunpack.c.l.s4 1983009808
        %v264 = vunpack.c.0.s8 %v263
        %v265 = vlaneseq
        %v266 = vshrl.u32 %v265, 7
        %v267 = vsub.s32 %v264, %v266
        %v268 = vrot.slane %v230, %v267
        %v269 = vcombine.high %v231, %v231
        %v271 = vunpack.c.l.s4 1983009808
        %v272 = vunpack.c.0.s8 %v271
        %v273 = vlaneseq
        %v274 = vshrl.u32 %v273, 7
        %v275 = vsub.s32 %v272, %v274
        %v276 = vrot.slane %v231, %v275
        %v278 = vunpack.c.l.s4 1983009808
        %v279 = vunpack.c.0.s8 %v278
        %v280 = vlaneseq
        %v281 = vshrl.u32 %v280, 7
        %v282 = vsub.s32 %v279, %v281
        %v283 = vrot.slane %v269, %v282
        %v284 = vcombine.high %v276, %v276
        %v285 = vcombine.high %v283, %v283
        %v287 = vunpack.c.l.s4 1983009808
        %v288 = vunpack.c.0.s8 %v287
        %v289 = vlaneseq
        %v290 = vshrl.u32 %v289, 7
        %v291 = vsub.s32 %v288, %v290
        %v292 = vrot.slane %v232, %v291
        %v293 = vcombine.high %v233, %v233
        %v295 = vunpack.c.l.s4 1983009808
        %v296 = vunpack.c.0.s8 %v295
        %v297 = vlaneseq
        %v298 = vshrl.u32 %v297, 7
        %v299 = vsub.s32 %v296, %v298
        %v300 = vrot.slane %v233, %v299
        %v302 = vunpack.c.l.s4 1983009808
        %v303 = vunpack.c.0.s8 %v302
        %v304 = vlaneseq
        %v305 = vshrl.u32 %v304, 7
        %v306 = vsub.s32 %v303, %v305
        %v307 = vrot.slane %v293, %v306
        %v308 = vcombine.high %v300, %v300
        %v309 = vcombine.high %v307, %v307
        %v311 = vunpack.c.l.s4 1983009808
        %v312 = vunpack.c.0.s8 %v311
        %v313 = vlaneseq
        %v314 = vshrl.u32 %v313, 7
        %v315 = vsub.s32 %v312, %v314
        %v316 = vrot.slane %v234, %v315
        %v317 = vcombine.high %v235, %v235
        %v319 = vunpack.c.l.s4 1983009808
        %v320 = vunpack.c.0.s8 %v319
        %v321 = vlaneseq
        %v322 = vshrl.u32 %v321, 7
        %v323 = vsub.s32 %v320, %v322
        %v324 = vrot.slane %v235, %v323
        %v326 = vunpack.c.l.s4 1983009808
        %v327 = vunpack.c.0.s8 %v326
        %v328 = vlaneseq
        %v329 = vshrl.u32 %v328, 7
        %v330 = vsub.s32 %v327, %v329
        %v331 = vrot.slane %v317, %v330
        %v332 = vcombine.high %v324, %v324
        %v333 = vcombine.high %v331, %v331
        %v335 = vunpack.c.l.s4 1983009808
        %v336 = vunpack.c.0.s8 %v335
        %v337 = vlaneseq
        %v338 = vshrl.u32 %v337, 7
        %v339 = vsub.s32 %v336, %v338
        %v340 = vrot.slane %v236, %v339
        %v341 = vld [vmem:[%s188] sm:$0xff]
        %v342 = vld [vmem:[%s188 + $0x8] sm:$0xff]
        %v343 = vld [vmem:[%s188 + $0x10] sm:$0xff]
        %v344 = vld [vmem:[%s188 + $0x18] sm:$0xff]
        %v345 = vld [vmem:[%s188 + $0x20] sm:$0xff]
        %v346 = vld [vmem:[%s188 + $0x28] sm:$0xff]
        %v347 = vld [vmem:[%s188 + $0x30] sm:$0xff]
        %v348 = vld [vmem:[%s188 + $0x38] sm:$0xff]
        %v349 = vld [vmem:[%s188 + $0x40] sm:$0xff]
        %v350 = vld [vmem:[%s188 + $0x48] sm:$0xff]
        %v351 = vld [vmem:[%s188 + $0x50] sm:$0xff]
        %v352 = vld [vmem:[%s188 + $0x58] sm:$0xff]
        %v353 = vld [vmem:[%s188 + $0x60] sm:$0xff]
        %v354 = vld [vmem:[%s188 + $0x68] sm:$0xff]
        %v355 = vld [vmem:[%s188 + $0x70] sm:$0xff]
        %v356 = vld [vmem:[%s188 + $0x78] sm:$0xff]
        %v357 = vld [vmem:[%s188 + $0x80] sm:$0xff]
        %v358 = vld [vmem:[%s188 + $0x88] sm:$0xff]
        %v359 = vlaneseq
        %v360 = vshrl.u32 %v359, 7
        %v361 = vadd.s32 %v360, 8
        %v362 = vlaneseq
        %v363 = vand.u32 %v362, 127
        %v364 = vmul.u32 %v360, 2
        %v365 = vmul.u32 %v361, 2
        %v366 = vsub.s32 %v363, %v364
        %v367 = vsub.s32 %v363, %v365
        %vm368 = vcmp.ge.s32.totalorder %v366, 0
        %vm369 = vcmp.ge.s32.totalorder %v367, 0
        %vm370 = vcmp.lt.s32.totalorder %v366, 2
        %vm371 = vcmp.lt.s32.totalorder %v367, 2
        %vm372 = vmand %vm368, %vm370
        %vm373 = vmand %vm369, %vm371
        %v374 = vsel %vm372, 1, 0
        %v375 = vsel %vm373, 1, 0
        %v376 = vcvt.s32.f32 %v374
        %v377 = vcvt.s32.f32 %v375
        %v378 = vcombine.low %v252, %v260
        %v379 = vcombine.low %v259, %v261
        %v381 = vunpack.c.l.s4 1983009808
        %v382 = vunpack.c.0.s8 %v381
        %v383 = vlaneseq
        %v384 = vshrl.u32 %v383, 7
        %v385 = vsub.s32 %v382, %v384
        %v386 = vrot.slane %v378, %v385
        %v388 = vunpack.c.l.s4 1983009808
        %v389 = vunpack.c.0.s8 %v388
        %v390 = vlaneseq
        %v391 = vshrl.u32 %v390, 7
        %v392 = vsub.s32 %v389, %v391
        %v393 = vrot.slane %v379, %v392
        %v394 = vcombine.low %v386, %v393
        %v395 = vcombine.low %v268, %v276
        %v396 = vcombine.low %v284, %v283
        %v398 = vunpack.c.l.s4 1983009808
        %v399 = vunpack.c.0.s8 %v398
        %v400 = vlaneseq
        %v401 = vshrl.u32 %v400, 7
        %v402 = vsub.s32 %v399, %v401
        %v403 = vrot.slane %v395, %v402
        %v405 = vunpack.c.l.s4 1983009808
        %v406 = vunpack.c.0.s8 %v405
        %v407 = vlaneseq
        %v408 = vshrl.u32 %v407, 7
        %v409 = vsub.s32 %v406, %v408
        %v410 = vrot.slane %v396, %v409
        %v411 = vcombine.low %v403, %v410
        %v412 = vcombine.low %v285, %v292
        %v413 = vcombine.low %v300, %v308
        %v415 = vunpack.c.l.s4 1983009808
        %v416 = vunpack.c.0.s8 %v415
        %v417 = vlaneseq
        %v418 = vshrl.u32 %v417, 7
        %v419 = vsub.s32 %v416, %v418
        %v420 = vrot.slane %v412, %v419
        %v422 = vunpack.c.l.s4 1983009808
        %v423 = vunpack.c.0.s8 %v422
        %v424 = vlaneseq
        %v425 = vshrl.u32 %v424, 7
        %v426 = vsub.s32 %v423, %v425
        %v427 = vrot.slane %v413, %v426
        %v428 = vcombine.low %v420, %v427
        %v429 = vcombine.low %v307, %v309
        %v430 = vcombine.low %v316, %v324
        %v432 = vunpack.c.l.s4 1983009808
        %v433 = vunpack.c.0.s8 %v432
        %v434 = vlaneseq
        %v435 = vshrl.u32 %v434, 7
        %v436 = vsub.s32 %v433, %v435
        %v437 = vrot.slane %v429, %v436
        %v439 = vunpack.c.l.s4 1983009808
        %v440 = vunpack.c.0.s8 %v439
        %v441 = vlaneseq
        %v442 = vshrl.u32 %v441, 7
        %v443 = vsub.s32 %v440, %v442
        %v444 = vrot.slane %v430, %v443
        %v445 = vcombine.low %v437, %v444
        %v446 = vcombine.low %v332, %v331
        %v447 = vcombine.low %v333, %v340
        %v449 = vunpack.c.l.s4 1983009808
        %v450 = vunpack.c.0.s8 %v449
        %v451 = vlaneseq
        %v452 = vshrl.u32 %v451, 7
        %v453 = vsub.s32 %v450, %v452
        %v454 = vrot.slane %v446, %v453
        %v456 = vunpack.c.l.s4 1983009808
        %v457 = vunpack.c.0.s8 %v456
        %v458 = vlaneseq
        %v459 = vshrl.u32 %v458, 7
        %v460 = vsub.s32 %v457, %v459
        %v461 = vrot.slane %v447, %v460
        %v462 = vcombine.low %v454, %v461
        %vm463 = vcmask 80896
        %v464 = vsel %vm463, %v394, 0
        %v466 = vsel %vm463, %v411, 0
        %v468 = vsel %vm463, %v428, 0
        %v470 = vsel %vm463, %v445, 0
        %v472 = vsel %vm463, %v462, 0
        %vm474 = vcmask 1041408
        %v476 = vsel %vm474, %v377, 0
        %478 = vmatprep.subr.mxu0 0.0
        %479 = vmatpush1.msra.mxu0 0.0
        %480 = vmatprep.subr.mxu0 0.0
        %481 = vmatpush1.msra.mxu0 0.0
        %482 = vmatprep.subr.mxu0 0.0
        %483 = vmatpush1.msra.mxu0 0.0
        %484 = vmatprep.subr.mxu0 0.0
        %485 = vmatpush1.msra.mxu0 0.0
        %486 = vmatprep.subr.mxu0 0.0
        %487 = vmatpush1.msra.mxu0 0.0
        %488 = vmatprep.subr.mxu0 0.0
        %489 = vmatpush1.msra.mxu0 0.0
        %490 = vmatprep.subr.mxu0 0.0
        %491 = vmatpush1.msra.mxu0 0.0
        %492 = vmatprep.subr.mxu0 0.0
        %493 = vmatpush1.msra.mxu0 0.0
        %494 = vmatprep.subr.mxu0 0.0
        %495 = vmatpush1.msra.mxu0 0.0
        %496 = vmatprep.subr.mxu0 0.0
        %497 = vmatpush1.msra.mxu0 0.0
        %498 = vmatprep.subr.mxu0 0.0
        %499 = vmatpush1.msra.mxu0 0.0
        %500 = vmatprep.subr.mxu0 0.0
        %501 = vmatpush1.msra.mxu0 0.0
        %502 = vmatprep.subr.mxu0 0.0
        %503 = vmatpush1.msra.mxu0 0.0
        %504 = vmatprep.subr.mxu0 0.0
        %505 = vmatpush1.msra.mxu0 0.0
        %506 = vmatprep.subr.mxu0 0.0
        %507 = vmatpush1.msra.mxu0 %v476
        %508 = vmatprep.subr.mxu0 0.0
        %509 = vmatpush1.msra.mxu0 %v376
        %510 = vmatprep.subr.mxu0 0.0
        %511 = vmatpush2.msra.mxu0 0.0
        %512 = vmatprep.subr.mxu0 0.0
        %513 = vmatpush2.msra.mxu0 0.0
        %514 = vmatprep.subr.mxu0 0.0
        %515 = vmatpush2.msra.mxu0 0.0
        %516 = vmatprep.subr.mxu0 0.0
        %517 = vmatpush2.msra.mxu0 0.0
        %518 = vmatprep.subr.mxu0 0.0
        %519 = vmatpush2.msra.mxu0 0.0
        %520 = vmatprep.subr.mxu0 0.0
        %521 = vmatpush2.msra.mxu0 0.0
        %522 = vmatprep.subr.mxu0 0.0
        %523 = vmatpush2.msra.mxu0 0.0
        %524 = vmatprep.subr.mxu0 0.0
        %525 = vmatpush2.msra.mxu0 0.0
        %526 = vmatprep.subr.mxu0 0.0
        %527 = vmatpush2.msra.mxu0 0.0
        %528 = vmatprep.subr.mxu0 0.0
        %529 = vmatpush2.msra.mxu0 0.0
        %530 = vmatprep.subr.mxu0 0.0
        %531 = vmatpush2.msra.mxu0 0.0
        %532 = vmatprep.subr.mxu0 0.0
        %533 = vmatpush2.msra.mxu0 0.0
        %534 = vmatprep.subr.mxu0 0.0
        %535 = vmatpush2.msra.mxu0 0.0
        %536 = vmatprep.subr.mxu0 0.0
        %537 = vmatpush2.msra.mxu0 0.0
        %538 = vmatprep.subr.mxu0 0.0
        %539 = vmatpush2.msra.mxu0 0.0
        %540 = vmatprep.subr.mxu0 0.0
        %541 = vmatpush2.msra.mxu0 0.0
        %542 = vmatprep.mubr.f32.mxu0 0.0
        %543 = vmatmul.mubr.f32.gmra.mxu0 %v464
        %v544 = vpop.f32.mrf.mxu0
        %v545 = vadd.f32 0.0, %v544
        %v546 = vpop.f32.mrf.mxu0
        %547 = vmatprep.mubr.f32.mxu0 0.0
        %548 = vmatmul.mubr.f32.gmra.mxu0 %v466
        %v549 = vpop.f32.mrf.mxu0
        %v550 = vadd.f32 0.0, %v549
        %v551 = vpop.f32.mrf.mxu0
        %552 = vmatprep.mubr.f32.mxu0 0.0
        %553 = vmatmul.mubr.f32.gmra.mxu0 %v468
        %v554 = vpop.f32.mrf.mxu0
        %v555 = vadd.f32 0.0, %v554
        %v556 = vpop.f32.mrf.mxu0
        %557 = vmatprep.mubr.f32.mxu0 0.0
        %558 = vmatmul.mubr.f32.gmra.mxu0 %v470
        %v559 = vpop.f32.mrf.mxu0
        %v560 = vadd.f32 0.0, %v559
        %v561 = vpop.f32.mrf.mxu0
        %562 = vmatprep.mubr.f32.mxu0 0.0
        %563 = vmatmul.mubr.f32.gmra.mxu0 %v472
        %v564 = vpop.f32.mrf.mxu0
        %v565 = vadd.f32 0.0, %v564
        %v566 = vpop.f32.mrf.mxu0
        %567 = vdwg.mxu0
        %v573 = vcombine.high %v545, %v545
        %v575 = vunpack.c.l.s4 1966171168
        %v576 = vunpack.c.0.s8 %v575
        %v577 = vlaneseq
        %v578 = vshrl.u32 %v577, 7
        %v579 = vsub.s32 %v576, %v578
        %v580 = vrot.slane %v545, %v579
        %v582 = vunpack.c.l.s4 1966171168
        %v583 = vunpack.c.0.s8 %v582
        %v584 = vlaneseq
        %v585 = vshrl.u32 %v584, 7
        %v586 = vsub.s32 %v583, %v585
        %v587 = vrot.slane %v573, %v586
        %v588 = vcombine.high %v580, %v580
        %v589 = vcombine.high %v587, %v587
        %v591 = vunpack.c.l.s4 1966171168
        %v592 = vunpack.c.0.s8 %v591
        %v593 = vlaneseq
        %v594 = vshrl.u32 %v593, 7
        %v595 = vsub.s32 %v592, %v594
        %v596 = vrot.slane %v580, %v595
        %v598 = vunpack.c.l.s4 1966171168
        %v599 = vunpack.c.0.s8 %v598
        %v600 = vlaneseq
        %v601 = vshrl.u32 %v600, 7
        %v602 = vsub.s32 %v599, %v601
        %v603 = vrot.slane %v587, %v602
        %v605 = vunpack.c.l.s4 1966171168
        %v606 = vunpack.c.0.s8 %v605
        %v607 = vlaneseq
        %v608 = vshrl.u32 %v607, 7
        %v609 = vsub.s32 %v606, %v608
        %v610 = vrot.slane %v588, %v609
        %v612 = vunpack.c.l.s4 1966171168
        %v613 = vunpack.c.0.s8 %v612
        %v614 = vlaneseq
        %v615 = vshrl.u32 %v614, 7
        %v616 = vsub.s32 %v613, %v615
        %v617 = vrot.slane %v589, %v616
        %v618 = vcombine.high %v596, %v596
        %v619 = vcombine.high %v603, %v603
        %v620 = vcombine.high %v610, %v610
        %v621 = vcombine.high %v617, %v617
        %v622 = vcombine.high %v550, %v550
        %v624 = vunpack.c.l.s4 1966171168
        %v625 = vunpack.c.0.s8 %v624
        %v626 = vlaneseq
        %v627 = vshrl.u32 %v626, 7
        %v628 = vsub.s32 %v625, %v627
        %v629 = vrot.slane %v550, %v628
        %v631 = vunpack.c.l.s4 1966171168
        %v632 = vunpack.c.0.s8 %v631
        %v633 = vlaneseq
        %v634 = vshrl.u32 %v633, 7
        %v635 = vsub.s32 %v632, %v634
        %v636 = vrot.slane %v622, %v635
        %v637 = vcombine.high %v629, %v629
        %v638 = vcombine.high %v636, %v636
        %v640 = vunpack.c.l.s4 1966171168
        %v641 = vunpack.c.0.s8 %v640
        %v642 = vlaneseq
        %v643 = vshrl.u32 %v642, 7
        %v644 = vsub.s32 %v641, %v643
        %v645 = vrot.slane %v629, %v644
        %v647 = vunpack.c.l.s4 1966171168
        %v648 = vunpack.c.0.s8 %v647
        %v649 = vlaneseq
        %v650 = vshrl.u32 %v649, 7
        %v651 = vsub.s32 %v648, %v650
        %v652 = vrot.slane %v636, %v651
        %v654 = vunpack.c.l.s4 1966171168
        %v655 = vunpack.c.0.s8 %v654
        %v656 = vlaneseq
        %v657 = vshrl.u32 %v656, 7
        %v658 = vsub.s32 %v655, %v657
        %v659 = vrot.slane %v637, %v658
        %v661 = vunpack.c.l.s4 1966171168
        %v662 = vunpack.c.0.s8 %v661
        %v663 = vlaneseq
        %v664 = vshrl.u32 %v663, 7
        %v665 = vsub.s32 %v662, %v664
        %v666 = vrot.slane %v638, %v665
        %v667 = vcombine.high %v645, %v645
        %v668 = vcombine.high %v652, %v652
        %v669 = vcombine.high %v659, %v659
        %v670 = vcombine.high %v666, %v666
        %v671 = vcombine.high %v555, %v555
        %v673 = vunpack.c.l.s4 1966171168
        %v674 = vunpack.c.0.s8 %v673
        %v675 = vlaneseq
        %v676 = vshrl.u32 %v675, 7
        %v677 = vsub.s32 %v674, %v676
        %v678 = vrot.slane %v555, %v677
        %v680 = vunpack.c.l.s4 1966171168
        %v681 = vunpack.c.0.s8 %v680
        %v682 = vlaneseq
        %v683 = vshrl.u32 %v682, 7
        %v684 = vsub.s32 %v681, %v683
        %v685 = vrot.slane %v671, %v684
        %v686 = vcombine.high %v678, %v678
        %v687 = vcombine.high %v685, %v685
        %v689 = vunpack.c.l.s4 1966171168
        %v690 = vunpack.c.0.s8 %v689
        %v691 = vlaneseq
        %v692 = vshrl.u32 %v691, 7
        %v693 = vsub.s32 %v690, %v692
        %v694 = vrot.slane %v678, %v693
        %v696 = vunpack.c.l.s4 1966171168
        %v697 = vunpack.c.0.s8 %v696
        %v698 = vlaneseq
        %v699 = vshrl.u32 %v698, 7
        %v700 = vsub.s32 %v697, %v699
        %v701 = vrot.slane %v685, %v700
        %v703 = vunpack.c.l.s4 1966171168
        %v704 = vunpack.c.0.s8 %v703
        %v705 = vlaneseq
        %v706 = vshrl.u32 %v705, 7
        %v707 = vsub.s32 %v704, %v706
        %v708 = vrot.slane %v686, %v707
        %v710 = vunpack.c.l.s4 1966171168
        %v711 = vunpack.c.0.s8 %v710
        %v712 = vlaneseq
        %v713 = vshrl.u32 %v712, 7
        %v714 = vsub.s32 %v711, %v713
        %v715 = vrot.slane %v687, %v714
        %v716 = vcombine.high %v694, %v694
        %v717 = vcombine.high %v701, %v701
        %v718 = vcombine.high %v708, %v708
        %v719 = vcombine.high %v715, %v715
        %v720 = vcombine.high %v560, %v560
        %v722 = vunpack.c.l.s4 1966171168
        %v723 = vunpack.c.0.s8 %v722
        %v724 = vlaneseq
        %v725 = vshrl.u32 %v724, 7
        %v726 = vsub.s32 %v723, %v725
        %v727 = vrot.slane %v560, %v726
        %v729 = vunpack.c.l.s4 1966171168
        %v730 = vunpack.c.0.s8 %v729
        %v731 = vlaneseq
        %v732 = vshrl.u32 %v731, 7
        %v733 = vsub.s32 %v730, %v732
        %v734 = vrot.slane %v720, %v733
        %v735 = vcombine.high %v727, %v727
        %v736 = vcombine.high %v734, %v734
        %v738 = vunpack.c.l.s4 1966171168
        %v739 = vunpack.c.0.s8 %v738
        %v740 = vlaneseq
        %v741 = vshrl.u32 %v740, 7
        %v742 = vsub.s32 %v739, %v741
        %v743 = vrot.slane %v727, %v742
        %v745 = vunpack.c.l.s4 1966171168
        %v746 = vunpack.c.0.s8 %v745
        %v747 = vlaneseq
        %v748 = vshrl.u32 %v747, 7
        %v749 = vsub.s32 %v746, %v748
        %v750 = vrot.slane %v734, %v749
        %v752 = vunpack.c.l.s4 1966171168
        %v753 = vunpack.c.0.s8 %v752
        %v754 = vlaneseq
        %v755 = vshrl.u32 %v754, 7
        %v756 = vsub.s32 %v753, %v755
        %v757 = vrot.slane %v735, %v756
        %v759 = vunpack.c.l.s4 1966171168
        %v760 = vunpack.c.0.s8 %v759
        %v761 = vlaneseq
        %v762 = vshrl.u32 %v761, 7
        %v763 = vsub.s32 %v760, %v762
        %v764 = vrot.slane %v736, %v763
        %v765 = vcombine.high %v743, %v743
        %v766 = vcombine.high %v750, %v750
        %v767 = vcombine.high %v757, %v757
        %v768 = vcombine.high %v764, %v764
        %v769 = vcombine.high %v565, %v565
        %v771 = vunpack.c.l.s4 1966171168
        %v772 = vunpack.c.0.s8 %v771
        %v773 = vlaneseq
        %v774 = vshrl.u32 %v773, 7
        %v775 = vsub.s32 %v772, %v774
        %v776 = vrot.slane %v565, %v775
        %v778 = vunpack.c.l.s4 1966171168
        %v779 = vunpack.c.0.s8 %v778
        %v780 = vlaneseq
        %v781 = vshrl.u32 %v780, 7
        %v782 = vsub.s32 %v779, %v781
        %v783 = vrot.slane %v769, %v782
        %v784 = vcombine.high %v776, %v776
        %v785 = vcombine.high %v783, %v783
        %v787 = vunpack.c.l.s4 1966171168
        %v788 = vunpack.c.0.s8 %v787
        %v789 = vlaneseq
        %v790 = vshrl.u32 %v789, 7
        %v791 = vsub.s32 %v788, %v790
        %v792 = vrot.slane %v776, %v791
        %v794 = vunpack.c.l.s4 1966171168
        %v795 = vunpack.c.0.s8 %v794
        %v796 = vlaneseq
        %v797 = vshrl.u32 %v796, 7
        %v798 = vsub.s32 %v795, %v797
        %v799 = vrot.slane %v783, %v798
        %v801 = vunpack.c.l.s4 1966171168
        %v802 = vunpack.c.0.s8 %v801
        %v803 = vlaneseq
        %v804 = vshrl.u32 %v803, 7
        %v805 = vsub.s32 %v802, %v804
        %v806 = vrot.slane %v784, %v805
        %v808 = vunpack.c.l.s4 1966171168
        %v809 = vunpack.c.0.s8 %v808
        %v810 = vlaneseq
        %v811 = vshrl.u32 %v810, 7
        %v812 = vsub.s32 %v809, %v811
        %v813 = vrot.slane %v785, %v812
        %v814 = vcombine.high %v792, %v792
        %v815 = vcombine.high %v799, %v799
        %v816 = vcombine.high %v806, %v806
        %v817 = vcombine.high %v813, %v813
        %v818 = vlaneseq
        %v819 = vshrl.u32 %v818, 7
        %v820 = vsub.s32 0, %v819
        %v821 = vrot.slane %v596, %v820
        %v822 = vlaneseq
        %v823 = vshrl.u32 %v822, 7
        %v824 = vsub.s32 0, %v823
        %v825 = vrot.slane %v610, %v824
        %v826 = vlaneseq
        %v827 = vshrl.u32 %v826, 7
        %v828 = vsub.s32 0, %v827
        %v829 = vrot.slane %v618, %v828
        %v830 = vlaneseq
        %v831 = vshrl.u32 %v830, 7
        %v832 = vsub.s32 0, %v831
        %v833 = vrot.slane %v620, %v832
        %v834 = vlaneseq
        %v835 = vshrl.u32 %v834, 7
        %v836 = vsub.s32 0, %v835
        %v837 = vrot.slane %v603, %v836
        %v838 = vlaneseq
        %v839 = vshrl.u32 %v838, 7
        %v840 = vsub.s32 0, %v839
        %v841 = vrot.slane %v617, %v840
        %v842 = vlaneseq
        %v843 = vshrl.u32 %v842, 7
        %v844 = vsub.s32 0, %v843
        %v845 = vrot.slane %v619, %v844
        %v846 = vlaneseq
        %v847 = vshrl.u32 %v846, 7
        %v848 = vsub.s32 0, %v847
        %v849 = vrot.slane %v621, %v848
        %v850 = vlaneseq
        %v851 = vshrl.u32 %v850, 7
        %v852 = vsub.s32 0, %v851
        %v853 = vrot.slane %v645, %v852
        %v854 = vlaneseq
        %v855 = vshrl.u32 %v854, 7
        %v856 = vsub.s32 0, %v855
        %v857 = vrot.slane %v659, %v856
        %v858 = vlaneseq
        %v859 = vshrl.u32 %v858, 7
        %v860 = vsub.s32 0, %v859
        %v861 = vrot.slane %v667, %v860
        %v862 = vlaneseq
        %v863 = vshrl.u32 %v862, 7
        %v864 = vsub.s32 0, %v863
        %v865 = vrot.slane %v669, %v864
        %v866 = vlaneseq
        %v867 = vshrl.u32 %v866, 7
        %v868 = vsub.s32 0, %v867
        %v869 = vrot.slane %v652, %v868
        %v870 = vlaneseq
        %v871 = vshrl.u32 %v870, 7
        %v872 = vsub.s32 0, %v871
        %v873 = vrot.slane %v666, %v872
        %v874 = vlaneseq
        %v875 = vshrl.u32 %v874, 7
        %v876 = vsub.s32 0, %v875
        %v877 = vrot.slane %v668, %v876
        %v878 = vlaneseq
        %v879 = vshrl.u32 %v878, 7
        %v880 = vsub.s32 0, %v879
        %v881 = vrot.slane %v670, %v880
        %v882 = vlaneseq
        %v883 = vshrl.u32 %v882, 7
        %v884 = vsub.s32 0, %v883
        %v885 = vrot.slane %v694, %v884
        %v886 = vlaneseq
        %v887 = vshrl.u32 %v886, 7
        %v888 = vsub.s32 0, %v887
        %v889 = vrot.slane %v708, %v888
        %v890 = vlaneseq
        %v891 = vshrl.u32 %v890, 7
        %v892 = vsub.s32 0, %v891
        %v893 = vrot.slane %v716, %v892
        %v894 = vlaneseq
        %v895 = vshrl.u32 %v894, 7
        %v896 = vsub.s32 0, %v895
        %v897 = vrot.slane %v718, %v896
        %v898 = vlaneseq
        %v899 = vshrl.u32 %v898, 7
        %v900 = vsub.s32 0, %v899
        %v901 = vrot.slane %v701, %v900
        %v902 = vlaneseq
        %v903 = vshrl.u32 %v902, 7
        %v904 = vsub.s32 0, %v903
        %v905 = vrot.slane %v715, %v904
        %v906 = vlaneseq
        %v907 = vshrl.u32 %v906, 7
        %v908 = vsub.s32 0, %v907
        %v909 = vrot.slane %v717, %v908
        %v910 = vlaneseq
        %v911 = vshrl.u32 %v910, 7
        %v912 = vsub.s32 0, %v911
        %v913 = vrot.slane %v719, %v912
        %v914 = vlaneseq
        %v915 = vshrl.u32 %v914, 7
        %v916 = vsub.s32 0, %v915
        %v917 = vrot.slane %v743, %v916
        %v918 = vlaneseq
        %v919 = vshrl.u32 %v918, 7
        %v920 = vsub.s32 0, %v919
        %v921 = vrot.slane %v757, %v920
        %v922 = vlaneseq
        %v923 = vshrl.u32 %v922, 7
        %v924 = vsub.s32 0, %v923
        %v925 = vrot.slane %v765, %v924
        %v926 = vlaneseq
        %v927 = vshrl.u32 %v926, 7
        %v928 = vsub.s32 0, %v927
        %v929 = vrot.slane %v767, %v928
        %v930 = vlaneseq
        %v931 = vshrl.u32 %v930, 7
        %v932 = vsub.s32 0, %v931
        %v933 = vrot.slane %v750, %v932
        %v934 = vlaneseq
        %v935 = vshrl.u32 %v934, 7
        %v936 = vsub.s32 0, %v935
        %v937 = vrot.slane %v764, %v936
        %v938 = vlaneseq
        %v939 = vshrl.u32 %v938, 7
        %v940 = vsub.s32 0, %v939
        %v941 = vrot.slane %v766, %v940
        %v942 = vlaneseq
        %v943 = vshrl.u32 %v942, 7
        %v944 = vsub.s32 0, %v943
        %v945 = vrot.slane %v768, %v944
        %v946 = vlaneseq
        %v947 = vshrl.u32 %v946, 7
        %v948 = vsub.s32 0, %v947
        %v949 = vrot.slane %v792, %v948
        %v950 = vlaneseq
        %v951 = vshrl.u32 %v950, 7
        %v952 = vsub.s32 0, %v951
        %v953 = vrot.slane %v806, %v952
        %v954 = vlaneseq
        %v955 = vshrl.u32 %v954, 7
        %v956 = vsub.s32 0, %v955
        %v957 = vrot.slane %v814, %v956
        %v958 = vlaneseq
        %v959 = vshrl.u32 %v958, 7
        %v960 = vsub.s32 0, %v959
        %v961 = vrot.slane %v816, %v960
        %v962 = vlaneseq
        %v963 = vshrl.u32 %v962, 7
        %v964 = vsub.s32 0, %v963
        %v965 = vrot.slane %v799, %v964
        %v966 = vlaneseq
        %v967 = vshrl.u32 %v966, 7
        %v968 = vsub.s32 0, %v967
        %v969 = vrot.slane %v813, %v968
        %v970 = vlaneseq
        %v971 = vshrl.u32 %v970, 7
        %v972 = vsub.s32 0, %v971
        %v973 = vrot.slane %v815, %v972
        %v974 = vlaneseq
        %v975 = vshrl.u32 %v974, 7
        %v976 = vsub.s32 0, %v975
        %v977 = vrot.slane %v817, %v976
        %v978 = vcombine.low %v821, %v825
        %v979 = vcombine.low %v829, %v833
        %v981 = vunpack.c.l.s4 1983009808
        %v982 = vunpack.c.0.s8 %v981
        %v983 = vlaneseq
        %v984 = vshrl.u32 %v983, 7
        %v985 = vsub.s32 %v982, %v984
        %v986 = vrot.slane %v978, %v985
        %v988 = vunpack.c.l.s4 1983009808
        %v989 = vunpack.c.0.s8 %v988
        %v990 = vlaneseq
        %v991 = vshrl.u32 %v990, 7
        %v992 = vsub.s32 %v989, %v991
        %v993 = vrot.slane %v979, %v992
        %v994 = vcombine.low %v986, %v993
        %v995 = vcombine.low %v837, %v841
        %v996 = vcombine.low %v845, %v849
        %v998 = vunpack.c.l.s4 1983009808
        %v999 = vunpack.c.0.s8 %v998
        %v1000 = vlaneseq
        %v1001 = vshrl.u32 %v1000, 7
        %v1002 = vsub.s32 %v999, %v1001
        %v1003 = vrot.slane %v995, %v1002
        %v1005 = vunpack.c.l.s4 1983009808
        %v1006 = vunpack.c.0.s8 %v1005
        %v1007 = vlaneseq
        %v1008 = vshrl.u32 %v1007, 7
        %v1009 = vsub.s32 %v1006, %v1008
        %v1010 = vrot.slane %v996, %v1009
        %v1011 = vcombine.low %v1003, %v1010
        %v1012 = vcombine.low %v861, %v865
        %v1013 = vcombine.low %v869, %v873
        %v1015 = vunpack.c.l.s4 1983009808
        %v1016 = vunpack.c.0.s8 %v1015
        %v1017 = vlaneseq
        %v1018 = vshrl.u32 %v1017, 7
        %v1019 = vsub.s32 %v1016, %v1018
        %v1020 = vrot.slane %v1012, %v1019
        %v1022 = vunpack.c.l.s4 1983009808
        %v1023 = vunpack.c.0.s8 %v1022
        %v1024 = vlaneseq
        %v1025 = vshrl.u32 %v1024, 7
        %v1026 = vsub.s32 %v1023, %v1025
        %v1027 = vrot.slane %v1013, %v1026
        %v1028 = vcombine.low %v1020, %v1027
        %v1029 = vcombine.low %v877, %v881
        %v1030 = vcombine.low %v885, %v889
        %v1032 = vunpack.c.l.s4 1983009808
        %v1033 = vunpack.c.0.s8 %v1032
        %v1034 = vlaneseq
        %v1035 = vshrl.u32 %v1034, 7
        %v1036 = vsub.s32 %v1033, %v1035
        %v1037 = vrot.slane %v1029, %v1036
        %v1039 = vunpack.c.l.s4 1983009808
        %v1040 = vunpack.c.0.s8 %v1039
        %v1041 = vlaneseq
        %v1042 = vshrl.u32 %v1041, 7
        %v1043 = vsub.s32 %v1040, %v1042
        %v1044 = vrot.slane %v1030, %v1043
        %v1045 = vcombine.low %v1037, %v1044
        %v1046 = vcombine.low %v901, %v905
        %v1047 = vcombine.low %v909, %v913
        %v1049 = vunpack.c.l.s4 1983009808
        %v1050 = vunpack.c.0.s8 %v1049
        %v1051 = vlaneseq
        %v1052 = vshrl.u32 %v1051, 7
        %v1053 = vsub.s32 %v1050, %v1052
        %v1054 = vrot.slane %v1046, %v1053
        %v1056 = vunpack.c.l.s4 1983009808
        %v1057 = vunpack.c.0.s8 %v1056
        %v1058 = vlaneseq
        %v1059 = vshrl.u32 %v1058, 7
        %v1060 = vsub.s32 %v1057, %v1059
        %v1061 = vrot.slane %v1047, %v1060
        %v1062 = vcombine.low %v1054, %v1061
        %v1063 = vcombine.low %v917, %v921
        %v1064 = vcombine.low %v925, %v929
        %v1066 = vunpack.c.l.s4 1983009808
        %v1067 = vunpack.c.0.s8 %v1066
        %v1068 = vlaneseq
        %v1069 = vshrl.u32 %v1068, 7
        %v1070 = vsub.s32 %v1067, %v1069
        %v1071 = vrot.slane %v1063, %v1070
        %v1073 = vunpack.c.l.s4 1983009808
        %v1074 = vunpack.c.0.s8 %v1073
        %v1075 = vlaneseq
        %v1076 = vshrl.u32 %v1075, 7
        %v1077 = vsub.s32 %v1074, %v1076
        %v1078 = vrot.slane %v1064, %v1077
        %v1079 = vcombine.low %v1071, %v1078
        %v1080 = vcombine.low %v941, %v945
        %v1081 = vcombine.low %v949, %v953
        %v1083 = vunpack.c.l.s4 1983009808
        %v1084 = vunpack.c.0.s8 %v1083
        %v1085 = vlaneseq
        %v1086 = vshrl.u32 %v1085, 7
        %v1087 = vsub.s32 %v1084, %v1086
        %v1088 = vrot.slane %v1080, %v1087
        %v1090 = vunpack.c.l.s4 1983009808
        %v1091 = vunpack.c.0.s8 %v1090
        %v1092 = vlaneseq
        %v1093 = vshrl.u32 %v1092, 7
        %v1094 = vsub.s32 %v1091, %v1093
        %v1095 = vrot.slane %v1081, %v1094
        %v1096 = vcombine.low %v1088, %v1095
        %v1097 = vcombine.low %v957, %v961
        %v1098 = vcombine.low %v965, %v969
        %v1100 = vunpack.c.l.s4 1983009808
        %v1101 = vunpack.c.0.s8 %v1100
        %v1102 = vlaneseq
        %v1103 = vshrl.u32 %v1102, 7
        %v1104 = vsub.s32 %v1101, %v1103
        %v1105 = vrot.slane %v1097, %v1104
        %v1107 = vunpack.c.l.s4 1983009808
        %v1108 = vunpack.c.0.s8 %v1107
        %v1109 = vlaneseq
        %v1110 = vshrl.u32 %v1109, 7
        %v1111 = vsub.s32 %v1108, %v1110
        %v1112 = vrot.slane %v1098, %v1111
        %v1113 = vcombine.low %v1105, %v1112
        %v1122 = vmul.f32 %v341, %v994
        %v1123 = vmul.f32 %v342, %v1011
        %v1124 = vmul.f32 %v341, %v1028
        %v1125 = vmul.f32 %v342, %v1045
        %v1126 = vmul.f32 %v341, %v1062
        %v1127 = vmul.f32 %v342, %v1079
        %v1128 = vmul.f32 %v341, %v1096
        %v1129 = vmul.f32 %v342, %v1113
        %v1130 = vadd.f32 %v1122, 0.0
        %v1131 = vadd.f32 %v1123, 0.0
        %v1132 = vadd.f32 %v1124, 0.0
        %v1133 = vadd.f32 %v1125, 0.0
        %v1134 = vadd.f32 %v1126, 0.0
        %v1135 = vadd.f32 %v1127, 0.0
        %v1136 = vadd.f32 %v1128, 0.0
        %v1137 = vadd.f32 %v1129, 0.0
        %v1138 = vcombine.low %v825, %v829
        %v1139 = vcombine.low %v833, %v837
        %v1141 = vunpack.c.l.s4 1983009808
        %v1142 = vunpack.c.0.s8 %v1141
        %v1143 = vlaneseq
        %v1144 = vshrl.u32 %v1143, 7
        %v1145 = vsub.s32 %v1142, %v1144
        %v1146 = vrot.slane %v1138, %v1145
        %v1148 = vunpack.c.l.s4 1983009808
        %v1149 = vunpack.c.0.s8 %v1148
        %v1150 = vlaneseq
        %v1151 = vshrl.u32 %v1150, 7
        %v1152 = vsub.s32 %v1149, %v1151
        %v1153 = vrot.slane %v1139, %v1152
        %v1154 = vcombine.low %v1146, %v1153
        %v1155 = vcombine.low %v841, %v845
        %v1156 = vcombine.low %v849, %v853
        %v1158 = vunpack.c.l.s4 1983009808
        %v1159 = vunpack.c.0.s8 %v1158
        %v1160 = vlaneseq
        %v1161 = vshrl.u32 %v1160, 7
        %v1162 = vsub.s32 %v1159, %v1161
        %v1163 = vrot.slane %v1155, %v1162
        %v1165 = vunpack.c.l.s4 1983009808
        %v1166 = vunpack.c.0.s8 %v1165
        %v1167 = vlaneseq
        %v1168 = vshrl.u32 %v1167, 7
        %v1169 = vsub.s32 %v1166, %v1168
        %v1170 = vrot.slane %v1156, %v1169
        %v1171 = vcombine.low %v1163, %v1170
        %v1172 = vcombine.low %v865, %v869
        %v1173 = vcombine.low %v873, %v877
        %v1175 = vunpack.c.l.s4 1983009808
        %v1176 = vunpack.c.0.s8 %v1175
        %v1177 = vlaneseq
        %v1178 = vshrl.u32 %v1177, 7
        %v1179 = vsub.s32 %v1176, %v1178
        %v1180 = vrot.slane %v1172, %v1179
        %v1182 = vunpack.c.l.s4 1983009808
        %v1183 = vunpack.c.0.s8 %v1182
        %v1184 = vlaneseq
        %v1185 = vshrl.u32 %v1184, 7
        %v1186 = vsub.s32 %v1183, %v1185
        %v1187 = vrot.slane %v1173, %v1186
        %v1188 = vcombine.low %v1180, %v1187
        %v1189 = vcombine.low %v881, %v885
        %v1190 = vcombine.low %v889, %v893
        %v1192 = vunpack.c.l.s4 1983009808
        %v1193 = vunpack.c.0.s8 %v1192
        %v1194 = vlaneseq
        %v1195 = vshrl.u32 %v1194, 7
        %v1196 = vsub.s32 %v1193, %v1195
        %v1197 = vrot.slane %v1189, %v1196
        %v1199 = vunpack.c.l.s4 1983009808
        %v1200 = vunpack.c.0.s8 %v1199
        %v1201 = vlaneseq
        %v1202 = vshrl.u32 %v1201, 7
        %v1203 = vsub.s32 %v1200, %v1202
        %v1204 = vrot.slane %v1190, %v1203
        %v1205 = vcombine.low %v1197, %v1204
        %v1206 = vcombine.low %v905, %v909
        %v1207 = vcombine.low %v913, %v917
        %v1209 = vunpack.c.l.s4 1983009808
        %v1210 = vunpack.c.0.s8 %v1209
        %v1211 = vlaneseq
        %v1212 = vshrl.u32 %v1211, 7
        %v1213 = vsub.s32 %v1210, %v1212
        %v1214 = vrot.slane %v1206, %v1213
        %v1216 = vunpack.c.l.s4 1983009808
        %v1217 = vunpack.c.0.s8 %v1216
        %v1218 = vlaneseq
        %v1219 = vshrl.u32 %v1218, 7
        %v1220 = vsub.s32 %v1217, %v1219
        %v1221 = vrot.slane %v1207, %v1220
        %v1222 = vcombine.low %v1214, %v1221
        %v1223 = vcombine.low %v921, %v925
        %v1224 = vcombine.low %v929, %v933
        %v1226 = vunpack.c.l.s4 1983009808
        %v1227 = vunpack.c.0.s8 %v1226
        %v1228 = vlaneseq
        %v1229 = vshrl.u32 %v1228, 7
        %v1230 = vsub.s32 %v1227, %v1229
        %v1231 = vrot.slane %v1223, %v1230
        %v1233 = vunpack.c.l.s4 1983009808
        %v1234 = vunpack.c.0.s8 %v1233
        %v1235 = vlaneseq
        %v1236 = vshrl.u32 %v1235, 7
        %v1237 = vsub.s32 %v1234, %v1236
        %v1238 = vrot.slane %v1224, %v1237
        %v1239 = vcombine.low %v1231, %v1238
        %v1240 = vcombine.low %v945, %v949
        %v1241 = vcombine.low %v953, %v957
        %v1243 = vunpack.c.l.s4 1983009808
        %v1244 = vunpack.c.0.s8 %v1243
        %v1245 = vlaneseq
        %v1246 = vshrl.u32 %v1245, 7
        %v1247 = vsub.s32 %v1244, %v1246
        %v1248 = vrot.slane %v1240, %v1247
        %v1250 = vunpack.c.l.s4 1983009808
        %v1251 = vunpack.c.0.s8 %v1250
        %v1252 = vlaneseq
        %v1253 = vshrl.u32 %v1252, 7
        %v1254 = vsub.s32 %v1251, %v1253
        %v1255 = vrot.slane %v1241, %v1254
        %v1256 = vcombine.low %v1248, %v1255
        %v1257 = vcombine.low %v961, %v965
        %v1258 = vcombine.low %v969, %v973
        %v1260 = vunpack.c.l.s4 1983009808
        %v1261 = vunpack.c.0.s8 %v1260
        %v1262 = vlaneseq
        %v1263 = vshrl.u32 %v1262, 7
        %v1264 = vsub.s32 %v1261, %v1263
        %v1265 = vrot.slane %v1257, %v1264
        %v1267 = vunpack.c.l.s4 1983009808
        %v1268 = vunpack.c.0.s8 %v1267
        %v1269 = vlaneseq
        %v1270 = vshrl.u32 %v1269, 7
        %v1271 = vsub.s32 %v1268, %v1270
        %v1272 = vrot.slane %v1258, %v1271
        %v1273 = vcombine.low %v1265, %v1272
        %v1282 = vmul.f32 %v347, %v1154
        %v1283 = vmul.f32 %v348, %v1171
        %v1284 = vmul.f32 %v347, %v1188
        %v1285 = vmul.f32 %v348, %v1205
        %v1286 = vmul.f32 %v347, %v1222
        %v1287 = vmul.f32 %v348, %v1239
        %v1288 = vmul.f32 %v347, %v1256
        %v1289 = vmul.f32 %v348, %v1273
        %v1290 = vadd.f32 %v1130, %v1282
        %v1291 = vadd.f32 %v1131, %v1283
        %v1292 = vadd.f32 %v1132, %v1284
        %v1293 = vadd.f32 %v1133, %v1285
        %v1294 = vadd.f32 %v1134, %v1286
        %v1295 = vadd.f32 %v1135, %v1287
        %v1296 = vadd.f32 %v1136, %v1288
        %v1297 = vadd.f32 %v1137, %v1289
        %v1298 = vcombine.low %v993, %v1003
        %v1299 = vcombine.low %v853, %v857
        %v1301 = vunpack.c.l.s4 1983009808
        %v1302 = vunpack.c.0.s8 %v1301
        %v1303 = vlaneseq
        %v1304 = vshrl.u32 %v1303, 7
        %v1305 = vsub.s32 %v1302, %v1304
        %v1306 = vrot.slane %v1299, %v1305
        %v1307 = vcombine.low %v1010, %v1306
        %v1308 = vcombine.low %v1027, %v1037
        %v1309 = vcombine.low %v893, %v897
        %v1311 = vunpack.c.l.s4 1983009808
        %v1312 = vunpack.c.0.s8 %v1311
        %v1313 = vlaneseq
        %v1314 = vshrl.u32 %v1313, 7
        %v1315 = vsub.s32 %v1312, %v1314
        %v1316 = vrot.slane %v1309, %v1315
        %v1317 = vcombine.low %v1044, %v1316
        %v1318 = vcombine.low %v1061, %v1071
        %v1319 = vcombine.low %v933, %v937
        %v1321 = vunpack.c.l.s4 1983009808
        %v1322 = vunpack.c.0.s8 %v1321
        %v1323 = vlaneseq
        %v1324 = vshrl.u32 %v1323, 7
        %v1325 = vsub.s32 %v1322, %v1324
        %v1326 = vrot.slane %v1319, %v1325
        %v1327 = vcombine.low %v1078, %v1326
        %v1328 = vcombine.low %v1095, %v1105
        %v1329 = vcombine.low %v973, %v977
        %v1331 = vunpack.c.l.s4 1983009808
        %v1332 = vunpack.c.0.s8 %v1331
        %v1333 = vlaneseq
        %v1334 = vshrl.u32 %v1333, 7
        %v1335 = vsub.s32 %v1332, %v1334
        %v1336 = vrot.slane %v1329, %v1335
        %v1337 = vcombine.low %v1112, %v1336
        %v1346 = vmul.f32 %v353, %v1298
        %v1347 = vmul.f32 %v354, %v1307
        %v1348 = vmul.f32 %v353, %v1308
        %v1349 = vmul.f32 %v354, %v1317
        %v1350 = vmul.f32 %v353, %v1318
        %v1351 = vmul.f32 %v354, %v1327
        %v1352 = vmul.f32 %v353, %v1328
        %v1353 = vmul.f32 %v354, %v1337
        %v1354 = vadd.f32 %v1290, %v1346
        %v1355 = vadd.f32 %v1291, %v1347
        %v1356 = vadd.f32 %v1292, %v1348
        %v1357 = vadd.f32 %v1293, %v1349
        %v1358 = vadd.f32 %v1294, %v1350
        %v1359 = vadd.f32 %v1295, %v1351
        %v1360 = vadd.f32 %v1296, %v1352
        %v1361 = vadd.f32 %v1297, %v1353
        %v1362 = vadd.s32 %v366, 2
        %v1363 = vadd.s32 %v367, 2
        %vm1364 = vcmp.ge.s32.totalorder %v1362, 0
        %vm1365 = vcmp.ge.s32.totalorder %v1363, 0
        %vm1366 = vcmp.lt.s32.totalorder %v1362, 2
        %vm1367 = vcmp.lt.s32.totalorder %v1363, 2
        %vm1368 = vmand %vm1364, %vm1366
        %vm1369 = vmand %vm1365, %vm1367
        %v1370 = vsel %vm1368, 1, 0
        %v1371 = vsel %vm1369, 1, 0
        %v1372 = vcvt.s32.f32 %v1370
        %v1373 = vcvt.s32.f32 %v1371
        %v1375 = vsel %vm474, %v1373, 0
        %1377 = vmatprep.subr.mxu0 0.0
        %1378 = vmatpush1.msra.mxu0 0.0
        %1379 = vmatprep.subr.mxu0 0.0
        %1380 = vmatpush1.msra.mxu0 0.0
        %1381 = vmatprep.subr.mxu0 0.0
        %1382 = vmatpush1.msra.mxu0 0.0
        %1383 = vmatprep.subr.mxu0 0.0
        %1384 = vmatpush1.msra.mxu0 0.0
        %1385 = vmatprep.subr.mxu0 0.0
        %1386 = vmatpush1.msra.mxu0 0.0
        %1387 = vmatprep.subr.mxu0 0.0
        %1388 = vmatpush1.msra.mxu0 0.0
        %1389 = vmatprep.subr.mxu0 0.0
        %1390 = vmatpush1.msra.mxu0 0.0
        %1391 = vmatprep.subr.mxu0 0.0
        %1392 = vmatpush1.msra.mxu0 0.0
        %1393 = vmatprep.subr.mxu0 0.0
        %1394 = vmatpush1.msra.mxu0 0.0
        %1395 = vmatprep.subr.mxu0 0.0
        %1396 = vmatpush1.msra.mxu0 0.0
        %1397 = vmatprep.subr.mxu0 0.0
        %1398 = vmatpush1.msra.mxu0 0.0
        %1399 = vmatprep.subr.mxu0 0.0
        %1400 = vmatpush1.msra.mxu0 0.0
        %1401 = vmatprep.subr.mxu0 0.0
        %1402 = vmatpush1.msra.mxu0 0.0
        %1403 = vmatprep.subr.mxu0 0.0
        %1404 = vmatpush1.msra.mxu0 0.0
        %1405 = vmatprep.subr.mxu0 0.0
        %1406 = vmatpush1.msra.mxu0 %v1375
        %1407 = vmatprep.subr.mxu0 0.0
        %1408 = vmatpush1.msra.mxu0 %v1372
        %1409 = vmatprep.subr.mxu0 0.0
        %1410 = vmatpush2.msra.mxu0 0.0
        %1411 = vmatprep.subr.mxu0 0.0
        %1412 = vmatpush2.msra.mxu0 0.0
        %1413 = vmatprep.subr.mxu0 0.0
        %1414 = vmatpush2.msra.mxu0 0.0
        %1415 = vmatprep.subr.mxu0 0.0
        %1416 = vmatpush2.msra.mxu0 0.0
        %1417 = vmatprep.subr.mxu0 0.0
        %1418 = vmatpush2.msra.mxu0 0.0
        %1419 = vmatprep.subr.mxu0 0.0
        %1420 = vmatpush2.msra.mxu0 0.0
        %1421 = vmatprep.subr.mxu0 0.0
        %1422 = vmatpush2.msra.mxu0 0.0
        %1423 = vmatprep.subr.mxu0 0.0
        %1424 = vmatpush2.msra.mxu0 0.0
        %1425 = vmatprep.subr.mxu0 0.0
        %1426 = vmatpush2.msra.mxu0 0.0
        %1427 = vmatprep.subr.mxu0 0.0
        %1428 = vmatpush2.msra.mxu0 0.0
        %1429 = vmatprep.subr.mxu0 0.0
        %1430 = vmatpush2.msra.mxu0 0.0
        %1431 = vmatprep.subr.mxu0 0.0
        %1432 = vmatpush2.msra.mxu0 0.0
        %1433 = vmatprep.subr.mxu0 0.0
        %1434 = vmatpush2.msra.mxu0 0.0
        %1435 = vmatprep.subr.mxu0 0.0
        %1436 = vmatpush2.msra.mxu0 0.0
        %1437 = vmatprep.subr.mxu0 0.0
        %1438 = vmatpush2.msra.mxu0 0.0
        %1439 = vmatprep.subr.mxu0 0.0
        %1440 = vmatpush2.msra.mxu0 0.0
        %1441 = vmatprep.mubr.f32.mxu0 0.0
        %1442 = vmatmul.mubr.f32.gmra.mxu0 %v464
        %v1443 = vpop.f32.mrf.mxu0
        %v1444 = vadd.f32 0.0, %v1443
        %v1445 = vpop.f32.mrf.mxu0
        %1446 = vmatprep.mubr.f32.mxu0 0.0
        %1447 = vmatmul.mubr.f32.gmra.mxu0 %v466
        %v1448 = vpop.f32.mrf.mxu0
        %v1449 = vadd.f32 0.0, %v1448
        %v1450 = vpop.f32.mrf.mxu0
        %1451 = vmatprep.mubr.f32.mxu0 0.0
        %1452 = vmatmul.mubr.f32.gmra.mxu0 %v468
        %v1453 = vpop.f32.mrf.mxu0
        %v1454 = vadd.f32 0.0, %v1453
        %v1455 = vpop.f32.mrf.mxu0
        %1456 = vmatprep.mubr.f32.mxu0 0.0
        %1457 = vmatmul.mubr.f32.gmra.mxu0 %v470
        %v1458 = vpop.f32.mrf.mxu0
        %v1459 = vadd.f32 0.0, %v1458
        %v1460 = vpop.f32.mrf.mxu0
        %1461 = vmatprep.mubr.f32.mxu0 0.0
        %1462 = vmatmul.mubr.f32.gmra.mxu0 %v472
        %v1463 = vpop.f32.mrf.mxu0
        %v1464 = vadd.f32 0.0, %v1463
        %v1465 = vpop.f32.mrf.mxu0
        %1466 = vdwg.mxu0
        %v1472 = vcombine.high %v1444, %v1444
        %v1474 = vunpack.c.l.s4 1966171168
        %v1475 = vunpack.c.0.s8 %v1474
        %v1476 = vlaneseq
        %v1477 = vshrl.u32 %v1476, 7
        %v1478 = vsub.s32 %v1475, %v1477
        %v1479 = vrot.slane %v1444, %v1478
        %v1481 = vunpack.c.l.s4 1966171168
        %v1482 = vunpack.c.0.s8 %v1481
        %v1483 = vlaneseq
        %v1484 = vshrl.u32 %v1483, 7
        %v1485 = vsub.s32 %v1482, %v1484
        %v1486 = vrot.slane %v1472, %v1485
        %v1487 = vcombine.high %v1479, %v1479
        %v1488 = vcombine.high %v1486, %v1486
        %v1490 = vunpack.c.l.s4 1966171168
        %v1491 = vunpack.c.0.s8 %v1490
        %v1492 = vlaneseq
        %v1493 = vshrl.u32 %v1492, 7
        %v1494 = vsub.s32 %v1491, %v1493
        %v1495 = vrot.slane %v1479, %v1494
        %v1497 = vunpack.c.l.s4 1966171168
        %v1498 = vunpack.c.0.s8 %v1497
        %v1499 = vlaneseq
        %v1500 = vshrl.u32 %v1499, 7
        %v1501 = vsub.s32 %v1498, %v1500
        %v1502 = vrot.slane %v1486, %v1501
        %v1504 = vunpack.c.l.s4 1966171168
        %v1505 = vunpack.c.0.s8 %v1504
        %v1506 = vlaneseq
        %v1507 = vshrl.u32 %v1506, 7
        %v1508 = vsub.s32 %v1505, %v1507
        %v1509 = vrot.slane %v1487, %v1508
        %v1511 = vunpack.c.l.s4 1966171168
        %v1512 = vunpack.c.0.s8 %v1511
        %v1513 = vlaneseq
        %v1514 = vshrl.u32 %v1513, 7
        %v1515 = vsub.s32 %v1512, %v1514
        %v1516 = vrot.slane %v1488, %v1515
        %v1517 = vcombine.high %v1495, %v1495
        %v1518 = vcombine.high %v1502, %v1502
        %v1519 = vcombine.high %v1509, %v1509
        %v1520 = vcombine.high %v1516, %v1516
        %v1521 = vcombine.high %v1449, %v1449
        %v1523 = vunpack.c.l.s4 1966171168
        %v1524 = vunpack.c.0.s8 %v1523
        %v1525 = vlaneseq
        %v1526 = vshrl.u32 %v1525, 7
        %v1527 = vsub.s32 %v1524, %v1526
        %v1528 = vrot.slane %v1449, %v1527
        %v1530 = vunpack.c.l.s4 1966171168
        %v1531 = vunpack.c.0.s8 %v1530
        %v1532 = vlaneseq
        %v1533 = vshrl.u32 %v1532, 7
        %v1534 = vsub.s32 %v1531, %v1533
        %v1535 = vrot.slane %v1521, %v1534
        %v1536 = vcombine.high %v1528, %v1528
        %v1537 = vcombine.high %v1535, %v1535
        %v1539 = vunpack.c.l.s4 1966171168
        %v1540 = vunpack.c.0.s8 %v1539
        %v1541 = vlaneseq
        %v1542 = vshrl.u32 %v1541, 7
        %v1543 = vsub.s32 %v1540, %v1542
        %v1544 = vrot.slane %v1528, %v1543
        %v1546 = vunpack.c.l.s4 1966171168
        %v1547 = vunpack.c.0.s8 %v1546
        %v1548 = vlaneseq
        %v1549 = vshrl.u32 %v1548, 7
        %v1550 = vsub.s32 %v1547, %v1549
        %v1551 = vrot.slane %v1535, %v1550
        %v1553 = vunpack.c.l.s4 1966171168
        %v1554 = vunpack.c.0.s8 %v1553
        %v1555 = vlaneseq
        %v1556 = vshrl.u32 %v1555, 7
        %v1557 = vsub.s32 %v1554, %v1556
        %v1558 = vrot.slane %v1536, %v1557
        %v1560 = vunpack.c.l.s4 1966171168
        %v1561 = vunpack.c.0.s8 %v1560
        %v1562 = vlaneseq
        %v1563 = vshrl.u32 %v1562, 7
        %v1564 = vsub.s32 %v1561, %v1563
        %v1565 = vrot.slane %v1537, %v1564
        %v1566 = vcombine.high %v1544, %v1544
        %v1567 = vcombine.high %v1551, %v1551
        %v1568 = vcombine.high %v1558, %v1558
        %v1569 = vcombine.high %v1565, %v1565
        %v1570 = vcombine.high %v1454, %v1454
        %v1572 = vunpack.c.l.s4 1966171168
        %v1573 = vunpack.c.0.s8 %v1572
        %v1574 = vlaneseq
        %v1575 = vshrl.u32 %v1574, 7
        %v1576 = vsub.s32 %v1573, %v1575
        %v1577 = vrot.slane %v1454, %v1576
        %v1579 = vunpack.c.l.s4 1966171168
        %v1580 = vunpack.c.0.s8 %v1579
        %v1581 = vlaneseq
        %v1582 = vshrl.u32 %v1581, 7
        %v1583 = vsub.s32 %v1580, %v1582
        %v1584 = vrot.slane %v1570, %v1583
        %v1585 = vcombine.high %v1577, %v1577
        %v1586 = vcombine.high %v1584, %v1584
        %v1588 = vunpack.c.l.s4 1966171168
        %v1589 = vunpack.c.0.s8 %v1588
        %v1590 = vlaneseq
        %v1591 = vshrl.u32 %v1590, 7
        %v1592 = vsub.s32 %v1589, %v1591
        %v1593 = vrot.slane %v1577, %v1592
        %v1595 = vunpack.c.l.s4 1966171168
        %v1596 = vunpack.c.0.s8 %v1595
        %v1597 = vlaneseq
        %v1598 = vshrl.u32 %v1597, 7
        %v1599 = vsub.s32 %v1596, %v1598
        %v1600 = vrot.slane %v1584, %v1599
        %v1602 = vunpack.c.l.s4 1966171168
        %v1603 = vunpack.c.0.s8 %v1602
        %v1604 = vlaneseq
        %v1605 = vshrl.u32 %v1604, 7
        %v1606 = vsub.s32 %v1603, %v1605
        %v1607 = vrot.slane %v1585, %v1606
        %v1609 = vunpack.c.l.s4 1966171168
        %v1610 = vunpack.c.0.s8 %v1609
        %v1611 = vlaneseq
        %v1612 = vshrl.u32 %v1611, 7
        %v1613 = vsub.s32 %v1610, %v1612
        %v1614 = vrot.slane %v1586, %v1613
        %v1615 = vcombine.high %v1593, %v1593
        %v1616 = vcombine.high %v1600, %v1600
        %v1617 = vcombine.high %v1607, %v1607
        %v1618 = vcombine.high %v1614, %v1614
        %v1619 = vcombine.high %v1459, %v1459
        %v1621 = vunpack.c.l.s4 1966171168
        %v1622 = vunpack.c.0.s8 %v1621
        %v1623 = vlaneseq
        %v1624 = vshrl.u32 %v1623, 7
        %v1625 = vsub.s32 %v1622, %v1624
        %v1626 = vrot.slane %v1459, %v1625
        %v1628 = vunpack.c.l.s4 1966171168
        %v1629 = vunpack.c.0.s8 %v1628
        %v1630 = vlaneseq
        %v1631 = vshrl.u32 %v1630, 7
        %v1632 = vsub.s32 %v1629, %v1631
        %v1633 = vrot.slane %v1619, %v1632
        %v1634 = vcombine.high %v1626, %v1626
        %v1635 = vcombine.high %v1633, %v1633
        %v1637 = vunpack.c.l.s4 1966171168
        %v1638 = vunpack.c.0.s8 %v1637
        %v1639 = vlaneseq
        %v1640 = vshrl.u32 %v1639, 7
        %v1641 = vsub.s32 %v1638, %v1640
        %v1642 = vrot.slane %v1626, %v1641
        %v1644 = vunpack.c.l.s4 1966171168
        %v1645 = vunpack.c.0.s8 %v1644
        %v1646 = vlaneseq
        %v1647 = vshrl.u32 %v1646, 7
        %v1648 = vsub.s32 %v1645, %v1647
        %v1649 = vrot.slane %v1633, %v1648
        %v1651 = vunpack.c.l.s4 1966171168
        %v1652 = vunpack.c.0.s8 %v1651
        %v1653 = vlaneseq
        %v1654 = vshrl.u32 %v1653, 7
        %v1655 = vsub.s32 %v1652, %v1654
        %v1656 = vrot.slane %v1634, %v1655
        %v1658 = vunpack.c.l.s4 1966171168
        %v1659 = vunpack.c.0.s8 %v1658
        %v1660 = vlaneseq
        %v1661 = vshrl.u32 %v1660, 7
        %v1662 = vsub.s32 %v1659, %v1661
        %v1663 = vrot.slane %v1635, %v1662
        %v1664 = vcombine.high %v1642, %v1642
        %v1665 = vcombine.high %v1649, %v1649
        %v1666 = vcombine.high %v1656, %v1656
        %v1667 = vcombine.high %v1663, %v1663
        %v1668 = vcombine.high %v1464, %v1464
        %v1670 = vunpack.c.l.s4 1966171168
        %v1671 = vunpack.c.0.s8 %v1670
        %v1672 = vlaneseq
        %v1673 = vshrl.u32 %v1672, 7
        %v1674 = vsub.s32 %v1671, %v1673
        %v1675 = vrot.slane %v1464, %v1674
        %v1677 = vunpack.c.l.s4 1966171168
        %v1678 = vunpack.c.0.s8 %v1677
        %v1679 = vlaneseq
        %v1680 = vshrl.u32 %v1679, 7
        %v1681 = vsub.s32 %v1678, %v1680
        %v1682 = vrot.slane %v1668, %v1681
        %v1683 = vcombine.high %v1675, %v1675
        %v1684 = vcombine.high %v1682, %v1682
        %v1686 = vunpack.c.l.s4 1966171168
        %v1687 = vunpack.c.0.s8 %v1686
        %v1688 = vlaneseq
        %v1689 = vshrl.u32 %v1688, 7
        %v1690 = vsub.s32 %v1687, %v1689
        %v1691 = vrot.slane %v1675, %v1690
        %v1693 = vunpack.c.l.s4 1966171168
        %v1694 = vunpack.c.0.s8 %v1693
        %v1695 = vlaneseq
        %v1696 = vshrl.u32 %v1695, 7
        %v1697 = vsub.s32 %v1694, %v1696
        %v1698 = vrot.slane %v1682, %v1697
        %v1700 = vunpack.c.l.s4 1966171168
        %v1701 = vunpack.c.0.s8 %v1700
        %v1702 = vlaneseq
        %v1703 = vshrl.u32 %v1702, 7
        %v1704 = vsub.s32 %v1701, %v1703
        %v1705 = vrot.slane %v1683, %v1704
        %v1707 = vunpack.c.l.s4 1966171168
        %v1708 = vunpack.c.0.s8 %v1707
        %v1709 = vlaneseq
        %v1710 = vshrl.u32 %v1709, 7
        %v1711 = vsub.s32 %v1708, %v1710
        %v1712 = vrot.slane %v1684, %v1711
        %v1713 = vcombine.high %v1691, %v1691
        %v1714 = vcombine.high %v1698, %v1698
        %v1715 = vcombine.high %v1705, %v1705
        %v1716 = vcombine.high %v1712, %v1712
        %v1717 = vlaneseq
        %v1718 = vshrl.u32 %v1717, 7
        %v1719 = vsub.s32 0, %v1718
        %v1720 = vrot.slane %v1495, %v1719
        %v1721 = vlaneseq
        %v1722 = vshrl.u32 %v1721, 7
        %v1723 = vsub.s32 0, %v1722
        %v1724 = vrot.slane %v1509, %v1723
        %v1725 = vlaneseq
        %v1726 = vshrl.u32 %v1725, 7
        %v1727 = vsub.s32 0, %v1726
        %v1728 = vrot.slane %v1517, %v1727
        %v1729 = vlaneseq
        %v1730 = vshrl.u32 %v1729, 7
        %v1731 = vsub.s32 0, %v1730
        %v1732 = vrot.slane %v1519, %v1731
        %v1733 = vlaneseq
        %v1734 = vshrl.u32 %v1733, 7
        %v1735 = vsub.s32 0, %v1734
        %v1736 = vrot.slane %v1502, %v1735
        %v1737 = vlaneseq
        %v1738 = vshrl.u32 %v1737, 7
        %v1739 = vsub.s32 0, %v1738
        %v1740 = vrot.slane %v1516, %v1739
        %v1741 = vlaneseq
        %v1742 = vshrl.u32 %v1741, 7
        %v1743 = vsub.s32 0, %v1742
        %v1744 = vrot.slane %v1518, %v1743
        %v1745 = vlaneseq
        %v1746 = vshrl.u32 %v1745, 7
        %v1747 = vsub.s32 0, %v1746
        %v1748 = vrot.slane %v1520, %v1747
        %v1749 = vlaneseq
        %v1750 = vshrl.u32 %v1749, 7
        %v1751 = vsub.s32 0, %v1750
        %v1752 = vrot.slane %v1544, %v1751
        %v1753 = vlaneseq
        %v1754 = vshrl.u32 %v1753, 7
        %v1755 = vsub.s32 0, %v1754
        %v1756 = vrot.slane %v1558, %v1755
        %v1757 = vlaneseq
        %v1758 = vshrl.u32 %v1757, 7
        %v1759 = vsub.s32 0, %v1758
        %v1760 = vrot.slane %v1566, %v1759
        %v1761 = vlaneseq
        %v1762 = vshrl.u32 %v1761, 7
        %v1763 = vsub.s32 0, %v1762
        %v1764 = vrot.slane %v1568, %v1763
        %v1765 = vlaneseq
        %v1766 = vshrl.u32 %v1765, 7
        %v1767 = vsub.s32 0, %v1766
        %v1768 = vrot.slane %v1551, %v1767
        %v1769 = vlaneseq
        %v1770 = vshrl.u32 %v1769, 7
        %v1771 = vsub.s32 0, %v1770
        %v1772 = vrot.slane %v1565, %v1771
        %v1773 = vlaneseq
        %v1774 = vshrl.u32 %v1773, 7
        %v1775 = vsub.s32 0, %v1774
        %v1776 = vrot.slane %v1567, %v1775
        %v1777 = vlaneseq
        %v1778 = vshrl.u32 %v1777, 7
        %v1779 = vsub.s32 0, %v1778
        %v1780 = vrot.slane %v1569, %v1779
        %v1781 = vlaneseq
        %v1782 = vshrl.u32 %v1781, 7
        %v1783 = vsub.s32 0, %v1782
        %v1784 = vrot.slane %v1593, %v1783
        %v1785 = vlaneseq
        %v1786 = vshrl.u32 %v1785, 7
        %v1787 = vsub.s32 0, %v1786
        %v1788 = vrot.slane %v1607, %v1787
        %v1789 = vlaneseq
        %v1790 = vshrl.u32 %v1789, 7
        %v1791 = vsub.s32 0, %v1790
        %v1792 = vrot.slane %v1615, %v1791
        %v1793 = vlaneseq
        %v1794 = vshrl.u32 %v1793, 7
        %v1795 = vsub.s32 0, %v1794
        %v1796 = vrot.slane %v1617, %v1795
        %v1797 = vlaneseq
        %v1798 = vshrl.u32 %v1797, 7
        %v1799 = vsub.s32 0, %v1798
        %v1800 = vrot.slane %v1600, %v1799
        %v1801 = vlaneseq
        %v1802 = vshrl.u32 %v1801, 7
        %v1803 = vsub.s32 0, %v1802
        %v1804 = vrot.slane %v1614, %v1803
        %v1805 = vlaneseq
        %v1806 = vshrl.u32 %v1805, 7
        %v1807 = vsub.s32 0, %v1806
        %v1808 = vrot.slane %v1616, %v1807
        %v1809 = vlaneseq
        %v1810 = vshrl.u32 %v1809, 7
        %v1811 = vsub.s32 0, %v1810
        %v1812 = vrot.slane %v1618, %v1811
        %v1813 = vlaneseq
        %v1814 = vshrl.u32 %v1813, 7
        %v1815 = vsub.s32 0, %v1814
        %v1816 = vrot.slane %v1642, %v1815
        %v1817 = vlaneseq
        %v1818 = vshrl.u32 %v1817, 7
        %v1819 = vsub.s32 0, %v1818
        %v1820 = vrot.slane %v1656, %v1819
        %v1821 = vlaneseq
        %v1822 = vshrl.u32 %v1821, 7
        %v1823 = vsub.s32 0, %v1822
        %v1824 = vrot.slane %v1664, %v1823
        %v1825 = vlaneseq
        %v1826 = vshrl.u32 %v1825, 7
        %v1827 = vsub.s32 0, %v1826
        %v1828 = vrot.slane %v1666, %v1827
        %v1829 = vlaneseq
        %v1830 = vshrl.u32 %v1829, 7
        %v1831 = vsub.s32 0, %v1830
        %v1832 = vrot.slane %v1649, %v1831
        %v1833 = vlaneseq
        %v1834 = vshrl.u32 %v1833, 7
        %v1835 = vsub.s32 0, %v1834
        %v1836 = vrot.slane %v1663, %v1835
        %v1837 = vlaneseq
        %v1838 = vshrl.u32 %v1837, 7
        %v1839 = vsub.s32 0, %v1838
        %v1840 = vrot.slane %v1665, %v1839
        %v1841 = vlaneseq
        %v1842 = vshrl.u32 %v1841, 7
        %v1843 = vsub.s32 0, %v1842
        %v1844 = vrot.slane %v1667, %v1843
        %v1845 = vlaneseq
        %v1846 = vshrl.u32 %v1845, 7
        %v1847 = vsub.s32 0, %v1846
        %v1848 = vrot.slane %v1691, %v1847
        %v1849 = vlaneseq
        %v1850 = vshrl.u32 %v1849, 7
        %v1851 = vsub.s32 0, %v1850
        %v1852 = vrot.slane %v1705, %v1851
        %v1853 = vlaneseq
        %v1854 = vshrl.u32 %v1853, 7
        %v1855 = vsub.s32 0, %v1854
        %v1856 = vrot.slane %v1713, %v1855
        %v1857 = vlaneseq
        %v1858 = vshrl.u32 %v1857, 7
        %v1859 = vsub.s32 0, %v1858
        %v1860 = vrot.slane %v1715, %v1859
        %v1861 = vlaneseq
        %v1862 = vshrl.u32 %v1861, 7
        %v1863 = vsub.s32 0, %v1862
        %v1864 = vrot.slane %v1698, %v1863
        %v1865 = vlaneseq
        %v1866 = vshrl.u32 %v1865, 7
        %v1867 = vsub.s32 0, %v1866
        %v1868 = vrot.slane %v1712, %v1867
        %v1869 = vlaneseq
        %v1870 = vshrl.u32 %v1869, 7
        %v1871 = vsub.s32 0, %v1870
        %v1872 = vrot.slane %v1714, %v1871
        %v1873 = vlaneseq
        %v1874 = vshrl.u32 %v1873, 7
        %v1875 = vsub.s32 0, %v1874
        %v1876 = vrot.slane %v1716, %v1875
        %v1877 = vcombine.low %v1720, %v1724
        %v1878 = vcombine.low %v1728, %v1732
        %v1880 = vunpack.c.l.s4 1983009808
        %v1881 = vunpack.c.0.s8 %v1880
        %v1882 = vlaneseq
        %v1883 = vshrl.u32 %v1882, 7
        %v1884 = vsub.s32 %v1881, %v1883
        %v1885 = vrot.slane %v1877, %v1884
        %v1887 = vunpack.c.l.s4 1983009808
        %v1888 = vunpack.c.0.s8 %v1887
        %v1889 = vlaneseq
        %v1890 = vshrl.u32 %v1889, 7
        %v1891 = vsub.s32 %v1888, %v1890
        %v1892 = vrot.slane %v1878, %v1891
        %v1893 = vcombine.low %v1885, %v1892
        %v1894 = vcombine.low %v1736, %v1740
        %v1895 = vcombine.low %v1744, %v1748
        %v1897 = vunpack.c.l.s4 1983009808
        %v1898 = vunpack.c.0.s8 %v1897
        %v1899 = vlaneseq
        %v1900 = vshrl.u32 %v1899, 7
        %v1901 = vsub.s32 %v1898, %v1900
        %v1902 = vrot.slane %v1894, %v1901
        %v1904 = vunpack.c.l.s4 1983009808
        %v1905 = vunpack.c.0.s8 %v1904
        %v1906 = vlaneseq
        %v1907 = vshrl.u32 %v1906, 7
        %v1908 = vsub.s32 %v1905, %v1907
        %v1909 = vrot.slane %v1895, %v1908
        %v1910 = vcombine.low %v1902, %v1909
        %v1911 = vcombine.low %v1760, %v1764
        %v1912 = vcombine.low %v1768, %v1772
        %v1914 = vunpack.c.l.s4 1983009808
        %v1915 = vunpack.c.0.s8 %v1914
        %v1916 = vlaneseq
        %v1917 = vshrl.u32 %v1916, 7
        %v1918 = vsub.s32 %v1915, %v1917
        %v1919 = vrot.slane %v1911, %v1918
        %v1921 = vunpack.c.l.s4 1983009808
        %v1922 = vunpack.c.0.s8 %v1921
        %v1923 = vlaneseq
        %v1924 = vshrl.u32 %v1923, 7
        %v1925 = vsub.s32 %v1922, %v1924
        %v1926 = vrot.slane %v1912, %v1925
        %v1927 = vcombine.low %v1919, %v1926
        %v1928 = vcombine.low %v1776, %v1780
        %v1929 = vcombine.low %v1784, %v1788
        %v1931 = vunpack.c.l.s4 1983009808
        %v1932 = vunpack.c.0.s8 %v1931
        %v1933 = vlaneseq
        %v1934 = vshrl.u32 %v1933, 7
        %v1935 = vsub.s32 %v1932, %v1934
        %v1936 = vrot.slane %v1928, %v1935
        %v1938 = vunpack.c.l.s4 1983009808
        %v1939 = vunpack.c.0.s8 %v1938
        %v1940 = vlaneseq
        %v1941 = vshrl.u32 %v1940, 7
        %v1942 = vsub.s32 %v1939, %v1941
        %v1943 = vrot.slane %v1929, %v1942
        %v1944 = vcombine.low %v1936, %v1943
        %v1945 = vcombine.low %v1800, %v1804
        %v1946 = vcombine.low %v1808, %v1812
        %v1948 = vunpack.c.l.s4 1983009808
        %v1949 = vunpack.c.0.s8 %v1948
        %v1950 = vlaneseq
        %v1951 = vshrl.u32 %v1950, 7
        %v1952 = vsub.s32 %v1949, %v1951
        %v1953 = vrot.slane %v1945, %v1952
        %v1955 = vunpack.c.l.s4 1983009808
        %v1956 = vunpack.c.0.s8 %v1955
        %v1957 = vlaneseq
        %v1958 = vshrl.u32 %v1957, 7
        %v1959 = vsub.s32 %v1956, %v1958
        %v1960 = vrot.slane %v1946, %v1959
        %v1961 = vcombine.low %v1953, %v1960
        %v1962 = vcombine.low %v1816, %v1820
        %v1963 = vcombine.low %v1824, %v1828
        %v1965 = vunpack.c.l.s4 1983009808
        %v1966 = vunpack.c.0.s8 %v1965
        %v1967 = vlaneseq
        %v1968 = vshrl.u32 %v1967, 7
        %v1969 = vsub.s32 %v1966, %v1968
        %v1970 = vrot.slane %v1962, %v1969
        %v1972 = vunpack.c.l.s4 1983009808
        %v1973 = vunpack.c.0.s8 %v1972
        %v1974 = vlaneseq
        %v1975 = vshrl.u32 %v1974, 7
        %v1976 = vsub.s32 %v1973, %v1975
        %v1977 = vrot.slane %v1963, %v1976
        %v1978 = vcombine.low %v1970, %v1977
        %v1979 = vcombine.low %v1840, %v1844
        %v1980 = vcombine.low %v1848, %v1852
        %v1982 = vunpack.c.l.s4 1983009808
        %v1983 = vunpack.c.0.s8 %v1982
        %v1984 = vlaneseq
        %v1985 = vshrl.u32 %v1984, 7
        %v1986 = vsub.s32 %v1983, %v1985
        %v1987 = vrot.slane %v1979, %v1986
        %v1989 = vunpack.c.l.s4 1983009808
        %v1990 = vunpack.c.0.s8 %v1989
        %v1991 = vlaneseq
        %v1992 = vshrl.u32 %v1991, 7
        %v1993 = vsub.s32 %v1990, %v1992
        %v1994 = vrot.slane %v1980, %v1993
        %v1995 = vcombine.low %v1987, %v1994
        %v1996 = vcombine.low %v1856, %v1860
        %v1997 = vcombine.low %v1864, %v1868
        %v1999 = vunpack.c.l.s4 1983009808
        %v2000 = vunpack.c.0.s8 %v1999
        %v2001 = vlaneseq
        %v2002 = vshrl.u32 %v2001, 7
        %v2003 = vsub.s32 %v2000, %v2002
        %v2004 = vrot.slane %v1996, %v2003
        %v2006 = vunpack.c.l.s4 1983009808
        %v2007 = vunpack.c.0.s8 %v2006
        %v2008 = vlaneseq
        %v2009 = vshrl.u32 %v2008, 7
        %v2010 = vsub.s32 %v2007, %v2009
        %v2011 = vrot.slane %v1997, %v2010
        %v2012 = vcombine.low %v2004, %v2011
        %v2021 = vmul.f32 %v343, %v1893
        %v2022 = vmul.f32 %v344, %v1910
        %v2023 = vmul.f32 %v343, %v1927
        %v2024 = vmul.f32 %v344, %v1944
        %v2025 = vmul.f32 %v343, %v1961
        %v2026 = vmul.f32 %v344, %v1978
        %v2027 = vmul.f32 %v343, %v1995
        %v2028 = vmul.f32 %v344, %v2012
        %v2029 = vadd.f32 %v1354, %v2021
        %v2030 = vadd.f32 %v1355, %v2022
        %v2031 = vadd.f32 %v1356, %v2023
        %v2032 = vadd.f32 %v1357, %v2024
        %v2033 = vadd.f32 %v1358, %v2025
        %v2034 = vadd.f32 %v1359, %v2026
        %v2035 = vadd.f32 %v1360, %v2027
        %v2036 = vadd.f32 %v1361, %v2028
        %v2037 = vcombine.low %v1724, %v1728
        %v2038 = vcombine.low %v1732, %v1736
        %v2040 = vunpack.c.l.s4 1983009808
        %v2041 = vunpack.c.0.s8 %v2040
        %v2042 = vlaneseq
        %v2043 = vshrl.u32 %v2042, 7
        %v2044 = vsub.s32 %v2041, %v2043
        %v2045 = vrot.slane %v2037, %v2044
        %v2047 = vunpack.c.l.s4 1983009808
        %v2048 = vunpack.c.0.s8 %v2047
        %v2049 = vlaneseq
        %v2050 = vshrl.u32 %v2049, 7
        %v2051 = vsub.s32 %v2048, %v2050
        %v2052 = vrot.slane %v2038, %v2051
        %v2053 = vcombine.low %v2045, %v2052
        %v2054 = vcombine.low %v1740, %v1744
        %v2055 = vcombine.low %v1748, %v1752
        %v2057 = vunpack.c.l.s4 1983009808
        %v2058 = vunpack.c.0.s8 %v2057
        %v2059 = vlaneseq
        %v2060 = vshrl.u32 %v2059, 7
        %v2061 = vsub.s32 %v2058, %v2060
        %v2062 = vrot.slane %v2054, %v2061
        %v2064 = vunpack.c.l.s4 1983009808
        %v2065 = vunpack.c.0.s8 %v2064
        %v2066 = vlaneseq
        %v2067 = vshrl.u32 %v2066, 7
        %v2068 = vsub.s32 %v2065, %v2067
        %v2069 = vrot.slane %v2055, %v2068
        %v2070 = vcombine.low %v2062, %v2069
        %v2071 = vcombine.low %v1764, %v1768
        %v2072 = vcombine.low %v1772, %v1776
        %v2074 = vunpack.c.l.s4 1983009808
        %v2075 = vunpack.c.0.s8 %v2074
        %v2076 = vlaneseq
        %v2077 = vshrl.u32 %v2076, 7
        %v2078 = vsub.s32 %v2075, %v2077
        %v2079 = vrot.slane %v2071, %v2078
        %v2081 = vunpack.c.l.s4 1983009808
        %v2082 = vunpack.c.0.s8 %v2081
        %v2083 = vlaneseq
        %v2084 = vshrl.u32 %v2083, 7
        %v2085 = vsub.s32 %v2082, %v2084
        %v2086 = vrot.slane %v2072, %v2085
        %v2087 = vcombine.low %v2079, %v2086
        %v2088 = vcombine.low %v1780, %v1784
        %v2089 = vcombine.low %v1788, %v1792
        %v2091 = vunpack.c.l.s4 1983009808
        %v2092 = vunpack.c.0.s8 %v2091
        %v2093 = vlaneseq
        %v2094 = vshrl.u32 %v2093, 7
        %v2095 = vsub.s32 %v2092, %v2094
        %v2096 = vrot.slane %v2088, %v2095
        %v2098 = vunpack.c.l.s4 1983009808
        %v2099 = vunpack.c.0.s8 %v2098
        %v2100 = vlaneseq
        %v2101 = vshrl.u32 %v2100, 7
        %v2102 = vsub.s32 %v2099, %v2101
        %v2103 = vrot.slane %v2089, %v2102
        %v2104 = vcombine.low %v2096, %v2103
        %v2105 = vcombine.low %v1804, %v1808
        %v2106 = vcombine.low %v1812, %v1816
        %v2108 = vunpack.c.l.s4 1983009808
        %v2109 = vunpack.c.0.s8 %v2108
        %v2110 = vlaneseq
        %v2111 = vshrl.u32 %v2110, 7
        %v2112 = vsub.s32 %v2109, %v2111
        %v2113 = vrot.slane %v2105, %v2112
        %v2115 = vunpack.c.l.s4 1983009808
        %v2116 = vunpack.c.0.s8 %v2115
        %v2117 = vlaneseq
        %v2118 = vshrl.u32 %v2117, 7
        %v2119 = vsub.s32 %v2116, %v2118
        %v2120 = vrot.slane %v2106, %v2119
        %v2121 = vcombine.low %v2113, %v2120
        %v2122 = vcombine.low %v1820, %v1824
        %v2123 = vcombine.low %v1828, %v1832
        %v2125 = vunpack.c.l.s4 1983009808
        %v2126 = vunpack.c.0.s8 %v2125
        %v2127 = vlaneseq
        %v2128 = vshrl.u32 %v2127, 7
        %v2129 = vsub.s32 %v2126, %v2128
        %v2130 = vrot.slane %v2122, %v2129
        %v2132 = vunpack.c.l.s4 1983009808
        %v2133 = vunpack.c.0.s8 %v2132
        %v2134 = vlaneseq
        %v2135 = vshrl.u32 %v2134, 7
        %v2136 = vsub.s32 %v2133, %v2135
        %v2137 = vrot.slane %v2123, %v2136
        %v2138 = vcombine.low %v2130, %v2137
        %v2139 = vcombine.low %v1844, %v1848
        %v2140 = vcombine.low %v1852, %v1856
        %v2142 = vunpack.c.l.s4 1983009808
        %v2143 = vunpack.c.0.s8 %v2142
        %v2144 = vlaneseq
        %v2145 = vshrl.u32 %v2144, 7
        %v2146 = vsub.s32 %v2143, %v2145
        %v2147 = vrot.slane %v2139, %v2146
        %v2149 = vunpack.c.l.s4 1983009808
        %v2150 = vunpack.c.0.s8 %v2149
        %v2151 = vlaneseq
        %v2152 = vshrl.u32 %v2151, 7
        %v2153 = vsub.s32 %v2150, %v2152
        %v2154 = vrot.slane %v2140, %v2153
        %v2155 = vcombine.low %v2147, %v2154
        %v2156 = vcombine.low %v1860, %v1864
        %v2157 = vcombine.low %v1868, %v1872
        %v2159 = vunpack.c.l.s4 1983009808
        %v2160 = vunpack.c.0.s8 %v2159
        %v2161 = vlaneseq
        %v2162 = vshrl.u32 %v2161, 7
        %v2163 = vsub.s32 %v2160, %v2162
        %v2164 = vrot.slane %v2156, %v2163
        %v2166 = vunpack.c.l.s4 1983009808
        %v2167 = vunpack.c.0.s8 %v2166
        %v2168 = vlaneseq
        %v2169 = vshrl.u32 %v2168, 7
        %v2170 = vsub.s32 %v2167, %v2169
        %v2171 = vrot.slane %v2157, %v2170
        %v2172 = vcombine.low %v2164, %v2171
        %v2181 = vmul.f32 %v349, %v2053
        %v2182 = vmul.f32 %v350, %v2070
        %v2183 = vmul.f32 %v349, %v2087
        %v2184 = vmul.f32 %v350, %v2104
        %v2185 = vmul.f32 %v349, %v2121
        %v2186 = vmul.f32 %v350, %v2138
        %v2187 = vmul.f32 %v349, %v2155
        %v2188 = vmul.f32 %v350, %v2172
        %v2189 = vadd.f32 %v2029, %v2181
        %v2190 = vadd.f32 %v2030, %v2182
        %v2191 = vadd.f32 %v2031, %v2183
        %v2192 = vadd.f32 %v2032, %v2184
        %v2193 = vadd.f32 %v2033, %v2185
        %v2194 = vadd.f32 %v2034, %v2186
        %v2195 = vadd.f32 %v2035, %v2187
        %v2196 = vadd.f32 %v2036, %v2188
        %v2197 = vcombine.low %v1892, %v1902
        %v2198 = vcombine.low %v1752, %v1756
        %v2200 = vunpack.c.l.s4 1983009808
        %v2201 = vunpack.c.0.s8 %v2200
        %v2202 = vlaneseq
        %v2203 = vshrl.u32 %v2202, 7
        %v2204 = vsub.s32 %v2201, %v2203
        %v2205 = vrot.slane %v2198, %v2204
        %v2206 = vcombine.low %v1909, %v2205
        %v2207 = vcombine.low %v1926, %v1936
        %v2208 = vcombine.low %v1792, %v1796
        %v2210 = vunpack.c.l.s4 1983009808
        %v2211 = vunpack.c.0.s8 %v2210
        %v2212 = vlaneseq
        %v2213 = vshrl.u32 %v2212, 7
        %v2214 = vsub.s32 %v2211, %v2213
        %v2215 = vrot.slane %v2208, %v2214
        %v2216 = vcombine.low %v1943, %v2215
        %v2217 = vcombine.low %v1960, %v1970
        %v2218 = vcombine.low %v1832, %v1836
        %v2220 = vunpack.c.l.s4 1983009808
        %v2221 = vunpack.c.0.s8 %v2220
        %v2222 = vlaneseq
        %v2223 = vshrl.u32 %v2222, 7
        %v2224 = vsub.s32 %v2221, %v2223
        %v2225 = vrot.slane %v2218, %v2224
        %v2226 = vcombine.low %v1977, %v2225
        %v2227 = vcombine.low %v1994, %v2004
        %v2228 = vcombine.low %v1872, %v1876
        %v2230 = vunpack.c.l.s4 1983009808
        %v2231 = vunpack.c.0.s8 %v2230
        %v2232 = vlaneseq
        %v2233 = vshrl.u32 %v2232, 7
        %v2234 = vsub.s32 %v2231, %v2233
        %v2235 = vrot.slane %v2228, %v2234
        %v2236 = vcombine.low %v2011, %v2235
        %v2245 = vmul.f32 %v355, %v2197
        %v2246 = vmul.f32 %v356, %v2206
        %v2247 = vmul.f32 %v355, %v2207
        %v2248 = vmul.f32 %v356, %v2216
        %v2249 = vmul.f32 %v355, %v2217
        %v2250 = vmul.f32 %v356, %v2226
        %v2251 = vmul.f32 %v355, %v2227
        %v2252 = vmul.f32 %v356, %v2236
        %v2253 = vadd.f32 %v2189, %v2245
        %v2254 = vadd.f32 %v2190, %v2246
        %v2255 = vadd.f32 %v2191, %v2247
        %v2256 = vadd.f32 %v2192, %v2248
        %v2257 = vadd.f32 %v2193, %v2249
        %v2258 = vadd.f32 %v2194, %v2250
        %v2259 = vadd.f32 %v2195, %v2251
        %v2260 = vadd.f32 %v2196, %v2252
        %v2261 = vadd.s32 %v366, 4
        %v2262 = vadd.s32 %v367, 4
        %vm2263 = vcmp.ge.s32.totalorder %v2261, 0
        %vm2264 = vcmp.ge.s32.totalorder %v2262, 0
        %vm2265 = vcmp.lt.s32.totalorder %v2261, 2
        %vm2266 = vcmp.lt.s32.totalorder %v2262, 2
        %vm2267 = vmand %vm2263, %vm2265
        %vm2268 = vmand %vm2264, %vm2266
        %v2269 = vsel %vm2267, 1, 0
        %v2270 = vsel %vm2268, 1, 0
        %v2271 = vcvt.s32.f32 %v2269
        %v2272 = vcvt.s32.f32 %v2270
        %v2274 = vsel %vm474, %v2272, 0
        %2276 = vmatprep.subr.mxu0 0.0
        %2277 = vmatpush1.msra.mxu0 0.0
        %2278 = vmatprep.subr.mxu0 0.0
        %2279 = vmatpush1.msra.mxu0 0.0
        %2280 = vmatprep.subr.mxu0 0.0
        %2281 = vmatpush1.msra.mxu0 0.0
        %2282 = vmatprep.subr.mxu0 0.0
        %2283 = vmatpush1.msra.mxu0 0.0
        %2284 = vmatprep.subr.mxu0 0.0
        %2285 = vmatpush1.msra.mxu0 0.0
        %2286 = vmatprep.subr.mxu0 0.0
        %2287 = vmatpush1.msra.mxu0 0.0
        %2288 = vmatprep.subr.mxu0 0.0
        %2289 = vmatpush1.msra.mxu0 0.0
        %2290 = vmatprep.subr.mxu0 0.0
        %2291 = vmatpush1.msra.mxu0 0.0
        %2292 = vmatprep.subr.mxu0 0.0
        %2293 = vmatpush1.msra.mxu0 0.0
        %2294 = vmatprep.subr.mxu0 0.0
        %2295 = vmatpush1.msra.mxu0 0.0
        %2296 = vmatprep.subr.mxu0 0.0
        %2297 = vmatpush1.msra.mxu0 0.0
        %2298 = vmatprep.subr.mxu0 0.0
        %2299 = vmatpush1.msra.mxu0 0.0
        %2300 = vmatprep.subr.mxu0 0.0
        %2301 = vmatpush1.msra.mxu0 0.0
        %2302 = vmatprep.subr.mxu0 0.0
        %2303 = vmatpush1.msra.mxu0 0.0
        %2304 = vmatprep.subr.mxu0 0.0
        %2305 = vmatpush1.msra.mxu0 %v2274
        %2306 = vmatprep.subr.mxu0 0.0
        %2307 = vmatpush1.msra.mxu0 %v2271
        %2308 = vmatprep.subr.mxu0 0.0
        %2309 = vmatpush2.msra.mxu0 0.0
        %2310 = vmatprep.subr.mxu0 0.0
        %2311 = vmatpush2.msra.mxu0 0.0
        %2312 = vmatprep.subr.mxu0 0.0
        %2313 = vmatpush2.msra.mxu0 0.0
        %2314 = vmatprep.subr.mxu0 0.0
        %2315 = vmatpush2.msra.mxu0 0.0
        %2316 = vmatprep.subr.mxu0 0.0
        %2317 = vmatpush2.msra.mxu0 0.0
        %2318 = vmatprep.subr.mxu0 0.0
        %2319 = vmatpush2.msra.mxu0 0.0
        %2320 = vmatprep.subr.mxu0 0.0
        %2321 = vmatpush2.msra.mxu0 0.0
        %2322 = vmatprep.subr.mxu0 0.0
        %2323 = vmatpush2.msra.mxu0 0.0
        %2324 = vmatprep.subr.mxu0 0.0
        %2325 = vmatpush2.msra.mxu0 0.0
        %2326 = vmatprep.subr.mxu0 0.0
        %2327 = vmatpush2.msra.mxu0 0.0
        %2328 = vmatprep.subr.mxu0 0.0
        %2329 = vmatpush2.msra.mxu0 0.0
        %2330 = vmatprep.subr.mxu0 0.0
        %2331 = vmatpush2.msra.mxu0 0.0
        %2332 = vmatprep.subr.mxu0 0.0
        %2333 = vmatpush2.msra.mxu0 0.0
        %2334 = vmatprep.subr.mxu0 0.0
        %2335 = vmatpush2.msra.mxu0 0.0
        %2336 = vmatprep.subr.mxu0 0.0
        %2337 = vmatpush2.msra.mxu0 0.0
        %2338 = vmatprep.subr.mxu0 0.0
        %2339 = vmatpush2.msra.mxu0 0.0
        %2340 = vmatprep.mubr.f32.mxu0 0.0
        %2341 = vmatmul.mubr.f32.gmra.mxu0 %v464
        %v2342 = vpop.f32.mrf.mxu0
        %v2343 = vadd.f32 0.0, %v2342
        %v2344 = vpop.f32.mrf.mxu0
        %2345 = vmatprep.mubr.f32.mxu0 0.0
        %2346 = vmatmul.mubr.f32.gmra.mxu0 %v466
        %v2347 = vpop.f32.mrf.mxu0
        %v2348 = vadd.f32 0.0, %v2347
        %v2349 = vpop.f32.mrf.mxu0
        %2350 = vmatprep.mubr.f32.mxu0 0.0
        %2351 = vmatmul.mubr.f32.gmra.mxu0 %v468
        %v2352 = vpop.f32.mrf.mxu0
        %v2353 = vadd.f32 0.0, %v2352
        %v2354 = vpop.f32.mrf.mxu0
        %2355 = vmatprep.mubr.f32.mxu0 0.0
        %2356 = vmatmul.mubr.f32.gmra.mxu0 %v470
        %v2357 = vpop.f32.mrf.mxu0
        %v2358 = vadd.f32 0.0, %v2357
        %v2359 = vpop.f32.mrf.mxu0
        %2360 = vmatprep.mubr.f32.mxu0 0.0
        %2361 = vmatmul.mubr.f32.gmra.mxu0 %v472
        %v2362 = vpop.f32.mrf.mxu0
        %v2363 = vadd.f32 0.0, %v2362
        %v2364 = vpop.f32.mrf.mxu0
        %2365 = vdwg.mxu0
        %v2371 = vcombine.high %v2343, %v2343
        %v2373 = vunpack.c.l.s4 1966171168
        %v2374 = vunpack.c.0.s8 %v2373
        %v2375 = vlaneseq
        %v2376 = vshrl.u32 %v2375, 7
        %v2377 = vsub.s32 %v2374, %v2376
        %v2378 = vrot.slane %v2343, %v2377
        %v2380 = vunpack.c.l.s4 1966171168
        %v2381 = vunpack.c.0.s8 %v2380
        %v2382 = vlaneseq
        %v2383 = vshrl.u32 %v2382, 7
        %v2384 = vsub.s32 %v2381, %v2383
        %v2385 = vrot.slane %v2371, %v2384
        %v2386 = vcombine.high %v2378, %v2378
        %v2387 = vcombine.high %v2385, %v2385
        %v2389 = vunpack.c.l.s4 1966171168
        %v2390 = vunpack.c.0.s8 %v2389
        %v2391 = vlaneseq
        %v2392 = vshrl.u32 %v2391, 7
        %v2393 = vsub.s32 %v2390, %v2392
        %v2394 = vrot.slane %v2378, %v2393
        %v2396 = vunpack.c.l.s4 1966171168
        %v2397 = vunpack.c.0.s8 %v2396
        %v2398 = vlaneseq
        %v2399 = vshrl.u32 %v2398, 7
        %v2400 = vsub.s32 %v2397, %v2399
        %v2401 = vrot.slane %v2385, %v2400
        %v2403 = vunpack.c.l.s4 1966171168
        %v2404 = vunpack.c.0.s8 %v2403
        %v2405 = vlaneseq
        %v2406 = vshrl.u32 %v2405, 7
        %v2407 = vsub.s32 %v2404, %v2406
        %v2408 = vrot.slane %v2386, %v2407
        %v2410 = vunpack.c.l.s4 1966171168
        %v2411 = vunpack.c.0.s8 %v2410
        %v2412 = vlaneseq
        %v2413 = vshrl.u32 %v2412, 7
        %v2414 = vsub.s32 %v2411, %v2413
        %v2415 = vrot.slane %v2387, %v2414
        %v2416 = vcombine.high %v2394, %v2394
        %v2417 = vcombine.high %v2401, %v2401
        %v2418 = vcombine.high %v2408, %v2408
        %v2419 = vcombine.high %v2415, %v2415
        %v2420 = vcombine.high %v2348, %v2348
        %v2422 = vunpack.c.l.s4 1966171168
        %v2423 = vunpack.c.0.s8 %v2422
        %v2424 = vlaneseq
        %v2425 = vshrl.u32 %v2424, 7
        %v2426 = vsub.s32 %v2423, %v2425
        %v2427 = vrot.slane %v2348, %v2426
        %v2429 = vunpack.c.l.s4 1966171168
        %v2430 = vunpack.c.0.s8 %v2429
        %v2431 = vlaneseq
        %v2432 = vshrl.u32 %v2431, 7
        %v2433 = vsub.s32 %v2430, %v2432
        %v2434 = vrot.slane %v2420, %v2433
        %v2435 = vcombine.high %v2427, %v2427
        %v2436 = vcombine.high %v2434, %v2434
        %v2438 = vunpack.c.l.s4 1966171168
        %v2439 = vunpack.c.0.s8 %v2438
        %v2440 = vlaneseq
        %v2441 = vshrl.u32 %v2440, 7
        %v2442 = vsub.s32 %v2439, %v2441
        %v2443 = vrot.slane %v2427, %v2442
        %v2445 = vunpack.c.l.s4 1966171168
        %v2446 = vunpack.c.0.s8 %v2445
        %v2447 = vlaneseq
        %v2448 = vshrl.u32 %v2447, 7
        %v2449 = vsub.s32 %v2446, %v2448
        %v2450 = vrot.slane %v2434, %v2449
        %v2452 = vunpack.c.l.s4 1966171168
        %v2453 = vunpack.c.0.s8 %v2452
        %v2454 = vlaneseq
        %v2455 = vshrl.u32 %v2454, 7
        %v2456 = vsub.s32 %v2453, %v2455
        %v2457 = vrot.slane %v2435, %v2456
        %v2459 = vunpack.c.l.s4 1966171168
        %v2460 = vunpack.c.0.s8 %v2459
        %v2461 = vlaneseq
        %v2462 = vshrl.u32 %v2461, 7
        %v2463 = vsub.s32 %v2460, %v2462
        %v2464 = vrot.slane %v2436, %v2463
        %v2465 = vcombine.high %v2443, %v2443
        %v2466 = vcombine.high %v2450, %v2450
        %v2467 = vcombine.high %v2457, %v2457
        %v2468 = vcombine.high %v2464, %v2464
        %v2469 = vcombine.high %v2353, %v2353
        %v2471 = vunpack.c.l.s4 1966171168
        %v2472 = vunpack.c.0.s8 %v2471
        %v2473 = vlaneseq
        %v2474 = vshrl.u32 %v2473, 7
        %v2475 = vsub.s32 %v2472, %v2474
        %v2476 = vrot.slane %v2353, %v2475
        %v2478 = vunpack.c.l.s4 1966171168
        %v2479 = vunpack.c.0.s8 %v2478
        %v2480 = vlaneseq
        %v2481 = vshrl.u32 %v2480, 7
        %v2482 = vsub.s32 %v2479, %v2481
        %v2483 = vrot.slane %v2469, %v2482
        %v2484 = vcombine.high %v2476, %v2476
        %v2485 = vcombine.high %v2483, %v2483
        %v2487 = vunpack.c.l.s4 1966171168
        %v2488 = vunpack.c.0.s8 %v2487
        %v2489 = vlaneseq
        %v2490 = vshrl.u32 %v2489, 7
        %v2491 = vsub.s32 %v2488, %v2490
        %v2492 = vrot.slane %v2476, %v2491
        %v2494 = vunpack.c.l.s4 1966171168
        %v2495 = vunpack.c.0.s8 %v2494
        %v2496 = vlaneseq
        %v2497 = vshrl.u32 %v2496, 7
        %v2498 = vsub.s32 %v2495, %v2497
        %v2499 = vrot.slane %v2483, %v2498
        %v2501 = vunpack.c.l.s4 1966171168
        %v2502 = vunpack.c.0.s8 %v2501
        %v2503 = vlaneseq
        %v2504 = vshrl.u32 %v2503, 7
        %v2505 = vsub.s32 %v2502, %v2504
        %v2506 = vrot.slane %v2484, %v2505
        %v2508 = vunpack.c.l.s4 1966171168
        %v2509 = vunpack.c.0.s8 %v2508
        %v2510 = vlaneseq
        %v2511 = vshrl.u32 %v2510, 7
        %v2512 = vsub.s32 %v2509, %v2511
        %v2513 = vrot.slane %v2485, %v2512
        %v2514 = vcombine.high %v2492, %v2492
        %v2515 = vcombine.high %v2499, %v2499
        %v2516 = vcombine.high %v2506, %v2506
        %v2517 = vcombine.high %v2513, %v2513
        %v2518 = vcombine.high %v2358, %v2358
        %v2520 = vunpack.c.l.s4 1966171168
        %v2521 = vunpack.c.0.s8 %v2520
        %v2522 = vlaneseq
        %v2523 = vshrl.u32 %v2522, 7
        %v2524 = vsub.s32 %v2521, %v2523
        %v2525 = vrot.slane %v2358, %v2524
        %v2527 = vunpack.c.l.s4 1966171168
        %v2528 = vunpack.c.0.s8 %v2527
        %v2529 = vlaneseq
        %v2530 = vshrl.u32 %v2529, 7
        %v2531 = vsub.s32 %v2528, %v2530
        %v2532 = vrot.slane %v2518, %v2531
        %v2533 = vcombine.high %v2525, %v2525
        %v2534 = vcombine.high %v2532, %v2532
        %v2536 = vunpack.c.l.s4 1966171168
        %v2537 = vunpack.c.0.s8 %v2536
        %v2538 = vlaneseq
        %v2539 = vshrl.u32 %v2538, 7
        %v2540 = vsub.s32 %v2537, %v2539
        %v2541 = vrot.slane %v2525, %v2540
        %v2543 = vunpack.c.l.s4 1966171168
        %v2544 = vunpack.c.0.s8 %v2543
        %v2545 = vlaneseq
        %v2546 = vshrl.u32 %v2545, 7
        %v2547 = vsub.s32 %v2544, %v2546
        %v2548 = vrot.slane %v2532, %v2547
        %v2550 = vunpack.c.l.s4 1966171168
        %v2551 = vunpack.c.0.s8 %v2550
        %v2552 = vlaneseq
        %v2553 = vshrl.u32 %v2552, 7
        %v2554 = vsub.s32 %v2551, %v2553
        %v2555 = vrot.slane %v2533, %v2554
        %v2557 = vunpack.c.l.s4 1966171168
        %v2558 = vunpack.c.0.s8 %v2557
        %v2559 = vlaneseq
        %v2560 = vshrl.u32 %v2559, 7
        %v2561 = vsub.s32 %v2558, %v2560
        %v2562 = vrot.slane %v2534, %v2561
        %v2563 = vcombine.high %v2541, %v2541
        %v2564 = vcombine.high %v2548, %v2548
        %v2565 = vcombine.high %v2555, %v2555
        %v2566 = vcombine.high %v2562, %v2562
        %v2567 = vcombine.high %v2363, %v2363
        %v2569 = vunpack.c.l.s4 1966171168
        %v2570 = vunpack.c.0.s8 %v2569
        %v2571 = vlaneseq
        %v2572 = vshrl.u32 %v2571, 7
        %v2573 = vsub.s32 %v2570, %v2572
        %v2574 = vrot.slane %v2363, %v2573
        %v2576 = vunpack.c.l.s4 1966171168
        %v2577 = vunpack.c.0.s8 %v2576
        %v2578 = vlaneseq
        %v2579 = vshrl.u32 %v2578, 7
        %v2580 = vsub.s32 %v2577, %v2579
        %v2581 = vrot.slane %v2567, %v2580
        %v2582 = vcombine.high %v2574, %v2574
        %v2583 = vcombine.high %v2581, %v2581
        %v2585 = vunpack.c.l.s4 1966171168
        %v2586 = vunpack.c.0.s8 %v2585
        %v2587 = vlaneseq
        %v2588 = vshrl.u32 %v2587, 7
        %v2589 = vsub.s32 %v2586, %v2588
        %v2590 = vrot.slane %v2574, %v2589
        %v2592 = vunpack.c.l.s4 1966171168
        %v2593 = vunpack.c.0.s8 %v2592
        %v2594 = vlaneseq
        %v2595 = vshrl.u32 %v2594, 7
        %v2596 = vsub.s32 %v2593, %v2595
        %v2597 = vrot.slane %v2581, %v2596
        %v2599 = vunpack.c.l.s4 1966171168
        %v2600 = vunpack.c.0.s8 %v2599
        %v2601 = vlaneseq
        %v2602 = vshrl.u32 %v2601, 7
        %v2603 = vsub.s32 %v2600, %v2602
        %v2604 = vrot.slane %v2582, %v2603
        %v2606 = vunpack.c.l.s4 1966171168
        %v2607 = vunpack.c.0.s8 %v2606
        %v2608 = vlaneseq
        %v2609 = vshrl.u32 %v2608, 7
        %v2610 = vsub.s32 %v2607, %v2609
        %v2611 = vrot.slane %v2583, %v2610
        %v2612 = vcombine.high %v2590, %v2590
        %v2613 = vcombine.high %v2597, %v2597
        %v2614 = vcombine.high %v2604, %v2604
        %v2615 = vcombine.high %v2611, %v2611
        %v2616 = vlaneseq
        %v2617 = vshrl.u32 %v2616, 7
        %v2618 = vsub.s32 0, %v2617
        %v2619 = vrot.slane %v2394, %v2618
        %v2620 = vlaneseq
        %v2621 = vshrl.u32 %v2620, 7
        %v2622 = vsub.s32 0, %v2621
        %v2623 = vrot.slane %v2408, %v2622
        %v2624 = vlaneseq
        %v2625 = vshrl.u32 %v2624, 7
        %v2626 = vsub.s32 0, %v2625
        %v2627 = vrot.slane %v2416, %v2626
        %v2628 = vlaneseq
        %v2629 = vshrl.u32 %v2628, 7
        %v2630 = vsub.s32 0, %v2629
        %v2631 = vrot.slane %v2418, %v2630
        %v2632 = vlaneseq
        %v2633 = vshrl.u32 %v2632, 7
        %v2634 = vsub.s32 0, %v2633
        %v2635 = vrot.slane %v2401, %v2634
        %v2636 = vlaneseq
        %v2637 = vshrl.u32 %v2636, 7
        %v2638 = vsub.s32 0, %v2637
        %v2639 = vrot.slane %v2415, %v2638
        %v2640 = vlaneseq
        %v2641 = vshrl.u32 %v2640, 7
        %v2642 = vsub.s32 0, %v2641
        %v2643 = vrot.slane %v2417, %v2642
        %v2644 = vlaneseq
        %v2645 = vshrl.u32 %v2644, 7
        %v2646 = vsub.s32 0, %v2645
        %v2647 = vrot.slane %v2419, %v2646
        %v2648 = vlaneseq
        %v2649 = vshrl.u32 %v2648, 7
        %v2650 = vsub.s32 0, %v2649
        %v2651 = vrot.slane %v2443, %v2650
        %v2652 = vlaneseq
        %v2653 = vshrl.u32 %v2652, 7
        %v2654 = vsub.s32 0, %v2653
        %v2655 = vrot.slane %v2457, %v2654
        %v2656 = vlaneseq
        %v2657 = vshrl.u32 %v2656, 7
        %v2658 = vsub.s32 0, %v2657
        %v2659 = vrot.slane %v2465, %v2658
        %v2660 = vlaneseq
        %v2661 = vshrl.u32 %v2660, 7
        %v2662 = vsub.s32 0, %v2661
        %v2663 = vrot.slane %v2467, %v2662
        %v2664 = vlaneseq
        %v2665 = vshrl.u32 %v2664, 7
        %v2666 = vsub.s32 0, %v2665
        %v2667 = vrot.slane %v2450, %v2666
        %v2668 = vlaneseq
        %v2669 = vshrl.u32 %v2668, 7
        %v2670 = vsub.s32 0, %v2669
        %v2671 = vrot.slane %v2464, %v2670
        %v2672 = vlaneseq
        %v2673 = vshrl.u32 %v2672, 7
        %v2674 = vsub.s32 0, %v2673
        %v2675 = vrot.slane %v2466, %v2674
        %v2676 = vlaneseq
        %v2677 = vshrl.u32 %v2676, 7
        %v2678 = vsub.s32 0, %v2677
        %v2679 = vrot.slane %v2468, %v2678
        %v2680 = vlaneseq
        %v2681 = vshrl.u32 %v2680, 7
        %v2682 = vsub.s32 0, %v2681
        %v2683 = vrot.slane %v2492, %v2682
        %v2684 = vlaneseq
        %v2685 = vshrl.u32 %v2684, 7
        %v2686 = vsub.s32 0, %v2685
        %v2687 = vrot.slane %v2506, %v2686
        %v2688 = vlaneseq
        %v2689 = vshrl.u32 %v2688, 7
        %v2690 = vsub.s32 0, %v2689
        %v2691 = vrot.slane %v2514, %v2690
        %v2692 = vlaneseq
        %v2693 = vshrl.u32 %v2692, 7
        %v2694 = vsub.s32 0, %v2693
        %v2695 = vrot.slane %v2516, %v2694
        %v2696 = vlaneseq
        %v2697 = vshrl.u32 %v2696, 7
        %v2698 = vsub.s32 0, %v2697
        %v2699 = vrot.slane %v2499, %v2698
        %v2700 = vlaneseq
        %v2701 = vshrl.u32 %v2700, 7
        %v2702 = vsub.s32 0, %v2701
        %v2703 = vrot.slane %v2513, %v2702
        %v2704 = vlaneseq
        %v2705 = vshrl.u32 %v2704, 7
        %v2706 = vsub.s32 0, %v2705
        %v2707 = vrot.slane %v2515, %v2706
        %v2708 = vlaneseq
        %v2709 = vshrl.u32 %v2708, 7
        %v2710 = vsub.s32 0, %v2709
        %v2711 = vrot.slane %v2517, %v2710
        %v2712 = vlaneseq
        %v2713 = vshrl.u32 %v2712, 7
        %v2714 = vsub.s32 0, %v2713
        %v2715 = vrot.slane %v2541, %v2714
        %v2716 = vlaneseq
        %v2717 = vshrl.u32 %v2716, 7
        %v2718 = vsub.s32 0, %v2717
        %v2719 = vrot.slane %v2555, %v2718
        %v2720 = vlaneseq
        %v2721 = vshrl.u32 %v2720, 7
        %v2722 = vsub.s32 0, %v2721
        %v2723 = vrot.slane %v2563, %v2722
        %v2724 = vlaneseq
        %v2725 = vshrl.u32 %v2724, 7
        %v2726 = vsub.s32 0, %v2725
        %v2727 = vrot.slane %v2565, %v2726
        %v2728 = vlaneseq
        %v2729 = vshrl.u32 %v2728, 7
        %v2730 = vsub.s32 0, %v2729
        %v2731 = vrot.slane %v2548, %v2730
        %v2732 = vlaneseq
        %v2733 = vshrl.u32 %v2732, 7
        %v2734 = vsub.s32 0, %v2733
        %v2735 = vrot.slane %v2562, %v2734
        %v2736 = vlaneseq
        %v2737 = vshrl.u32 %v2736, 7
        %v2738 = vsub.s32 0, %v2737
        %v2739 = vrot.slane %v2564, %v2738
        %v2740 = vlaneseq
        %v2741 = vshrl.u32 %v2740, 7
        %v2742 = vsub.s32 0, %v2741
        %v2743 = vrot.slane %v2566, %v2742
        %v2744 = vlaneseq
        %v2745 = vshrl.u32 %v2744, 7
        %v2746 = vsub.s32 0, %v2745
        %v2747 = vrot.slane %v2590, %v2746
        %v2748 = vlaneseq
        %v2749 = vshrl.u32 %v2748, 7
        %v2750 = vsub.s32 0, %v2749
        %v2751 = vrot.slane %v2604, %v2750
        %v2752 = vlaneseq
        %v2753 = vshrl.u32 %v2752, 7
        %v2754 = vsub.s32 0, %v2753
        %v2755 = vrot.slane %v2612, %v2754
        %v2756 = vlaneseq
        %v2757 = vshrl.u32 %v2756, 7
        %v2758 = vsub.s32 0, %v2757
        %v2759 = vrot.slane %v2614, %v2758
        %v2760 = vlaneseq
        %v2761 = vshrl.u32 %v2760, 7
        %v2762 = vsub.s32 0, %v2761
        %v2763 = vrot.slane %v2597, %v2762
        %v2764 = vlaneseq
        %v2765 = vshrl.u32 %v2764, 7
        %v2766 = vsub.s32 0, %v2765
        %v2767 = vrot.slane %v2611, %v2766
        %v2768 = vlaneseq
        %v2769 = vshrl.u32 %v2768, 7
        %v2770 = vsub.s32 0, %v2769
        %v2771 = vrot.slane %v2613, %v2770
        %v2772 = vlaneseq
        %v2773 = vshrl.u32 %v2772, 7
        %v2774 = vsub.s32 0, %v2773
        %v2775 = vrot.slane %v2615, %v2774
        %v2776 = vcombine.low %v2619, %v2623
        %v2777 = vcombine.low %v2627, %v2631
        %v2779 = vunpack.c.l.s4 1983009808
        %v2780 = vunpack.c.0.s8 %v2779
        %v2781 = vlaneseq
        %v2782 = vshrl.u32 %v2781, 7
        %v2783 = vsub.s32 %v2780, %v2782
        %v2784 = vrot.slane %v2776, %v2783
        %v2786 = vunpack.c.l.s4 1983009808
        %v2787 = vunpack.c.0.s8 %v2786
        %v2788 = vlaneseq
        %v2789 = vshrl.u32 %v2788, 7
        %v2790 = vsub.s32 %v2787, %v2789
        %v2791 = vrot.slane %v2777, %v2790
        %v2792 = vcombine.low %v2784, %v2791
        %v2793 = vcombine.low %v2635, %v2639
        %v2794 = vcombine.low %v2643, %v2647
        %v2796 = vunpack.c.l.s4 1983009808
        %v2797 = vunpack.c.0.s8 %v2796
        %v2798 = vlaneseq
        %v2799 = vshrl.u32 %v2798, 7
        %v2800 = vsub.s32 %v2797, %v2799
        %v2801 = vrot.slane %v2793, %v2800
        %v2803 = vunpack.c.l.s4 1983009808
        %v2804 = vunpack.c.0.s8 %v2803
        %v2805 = vlaneseq
        %v2806 = vshrl.u32 %v2805, 7
        %v2807 = vsub.s32 %v2804, %v2806
        %v2808 = vrot.slane %v2794, %v2807
        %v2809 = vcombine.low %v2801, %v2808
        %v2810 = vcombine.low %v2659, %v2663
        %v2811 = vcombine.low %v2667, %v2671
        %v2813 = vunpack.c.l.s4 1983009808
        %v2814 = vunpack.c.0.s8 %v2813
        %v2815 = vlaneseq
        %v2816 = vshrl.u32 %v2815, 7
        %v2817 = vsub.s32 %v2814, %v2816
        %v2818 = vrot.slane %v2810, %v2817
        %v2820 = vunpack.c.l.s4 1983009808
        %v2821 = vunpack.c.0.s8 %v2820
        %v2822 = vlaneseq
        %v2823 = vshrl.u32 %v2822, 7
        %v2824 = vsub.s32 %v2821, %v2823
        %v2825 = vrot.slane %v2811, %v2824
        %v2826 = vcombine.low %v2818, %v2825
        %v2827 = vcombine.low %v2675, %v2679
        %v2828 = vcombine.low %v2683, %v2687
        %v2830 = vunpack.c.l.s4 1983009808
        %v2831 = vunpack.c.0.s8 %v2830
        %v2832 = vlaneseq
        %v2833 = vshrl.u32 %v2832, 7
        %v2834 = vsub.s32 %v2831, %v2833
        %v2835 = vrot.slane %v2827, %v2834
        %v2837 = vunpack.c.l.s4 1983009808
        %v2838 = vunpack.c.0.s8 %v2837
        %v2839 = vlaneseq
        %v2840 = vshrl.u32 %v2839, 7
        %v2841 = vsub.s32 %v2838, %v2840
        %v2842 = vrot.slane %v2828, %v2841
        %v2843 = vcombine.low %v2835, %v2842
        %v2844 = vcombine.low %v2699, %v2703
        %v2845 = vcombine.low %v2707, %v2711
        %v2847 = vunpack.c.l.s4 1983009808
        %v2848 = vunpack.c.0.s8 %v2847
        %v2849 = vlaneseq
        %v2850 = vshrl.u32 %v2849, 7
        %v2851 = vsub.s32 %v2848, %v2850
        %v2852 = vrot.slane %v2844, %v2851
        %v2854 = vunpack.c.l.s4 1983009808
        %v2855 = vunpack.c.0.s8 %v2854
        %v2856 = vlaneseq
        %v2857 = vshrl.u32 %v2856, 7
        %v2858 = vsub.s32 %v2855, %v2857
        %v2859 = vrot.slane %v2845, %v2858
        %v2860 = vcombine.low %v2852, %v2859
        %v2861 = vcombine.low %v2715, %v2719
        %v2862 = vcombine.low %v2723, %v2727
        %v2864 = vunpack.c.l.s4 1983009808
        %v2865 = vunpack.c.0.s8 %v2864
        %v2866 = vlaneseq
        %v2867 = vshrl.u32 %v2866, 7
        %v2868 = vsub.s32 %v2865, %v2867
        %v2869 = vrot.slane %v2861, %v2868
        %v2871 = vunpack.c.l.s4 1983009808
        %v2872 = vunpack.c.0.s8 %v2871
        %v2873 = vlaneseq
        %v2874 = vshrl.u32 %v2873, 7
        %v2875 = vsub.s32 %v2872, %v2874
        %v2876 = vrot.slane %v2862, %v2875
        %v2877 = vcombine.low %v2869, %v2876
        %v2878 = vcombine.low %v2739, %v2743
        %v2879 = vcombine.low %v2747, %v2751
        %v2881 = vunpack.c.l.s4 1983009808
        %v2882 = vunpack.c.0.s8 %v2881
        %v2883 = vlaneseq
        %v2884 = vshrl.u32 %v2883, 7
        %v2885 = vsub.s32 %v2882, %v2884
        %v2886 = vrot.slane %v2878, %v2885
        %v2888 = vunpack.c.l.s4 1983009808
        %v2889 = vunpack.c.0.s8 %v2888
        %v2890 = vlaneseq
        %v2891 = vshrl.u32 %v2890, 7
        %v2892 = vsub.s32 %v2889, %v2891
        %v2893 = vrot.slane %v2879, %v2892
        %v2894 = vcombine.low %v2886, %v2893
        %v2895 = vcombine.low %v2755, %v2759
        %v2896 = vcombine.low %v2763, %v2767
        %v2898 = vunpack.c.l.s4 1983009808
        %v2899 = vunpack.c.0.s8 %v2898
        %v2900 = vlaneseq
        %v2901 = vshrl.u32 %v2900, 7
        %v2902 = vsub.s32 %v2899, %v2901
        %v2903 = vrot.slane %v2895, %v2902
        %v2905 = vunpack.c.l.s4 1983009808
        %v2906 = vunpack.c.0.s8 %v2905
        %v2907 = vlaneseq
        %v2908 = vshrl.u32 %v2907, 7
        %v2909 = vsub.s32 %v2906, %v2908
        %v2910 = vrot.slane %v2896, %v2909
        %v2911 = vcombine.low %v2903, %v2910
        %v2920 = vmul.f32 %v345, %v2792
        %v2921 = vmul.f32 %v346, %v2809
        %v2922 = vmul.f32 %v345, %v2826
        %v2923 = vmul.f32 %v346, %v2843
        %v2924 = vmul.f32 %v345, %v2860
        %v2925 = vmul.f32 %v346, %v2877
        %v2926 = vmul.f32 %v345, %v2894
        %v2927 = vmul.f32 %v346, %v2911
        %v2928 = vadd.f32 %v2253, %v2920
        %v2929 = vadd.f32 %v2254, %v2921
        %v2930 = vadd.f32 %v2255, %v2922
        %v2931 = vadd.f32 %v2256, %v2923
        %v2932 = vadd.f32 %v2257, %v2924
        %v2933 = vadd.f32 %v2258, %v2925
        %v2934 = vadd.f32 %v2259, %v2926
        %v2935 = vadd.f32 %v2260, %v2927
        %v2936 = vcombine.low %v2623, %v2627
        %v2937 = vcombine.low %v2631, %v2635
        %v2939 = vunpack.c.l.s4 1983009808
        %v2940 = vunpack.c.0.s8 %v2939
        %v2941 = vlaneseq
        %v2942 = vshrl.u32 %v2941, 7
        %v2943 = vsub.s32 %v2940, %v2942
        %v2944 = vrot.slane %v2936, %v2943
        %v2946 = vunpack.c.l.s4 1983009808
        %v2947 = vunpack.c.0.s8 %v2946
        %v2948 = vlaneseq
        %v2949 = vshrl.u32 %v2948, 7
        %v2950 = vsub.s32 %v2947, %v2949
        %v2951 = vrot.slane %v2937, %v2950
        %v2952 = vcombine.low %v2944, %v2951
        %v2953 = vcombine.low %v2639, %v2643
        %v2954 = vcombine.low %v2647, %v2651
        %v2956 = vunpack.c.l.s4 1983009808
        %v2957 = vunpack.c.0.s8 %v2956
        %v2958 = vlaneseq
        %v2959 = vshrl.u32 %v2958, 7
        %v2960 = vsub.s32 %v2957, %v2959
        %v2961 = vrot.slane %v2953, %v2960
        %v2963 = vunpack.c.l.s4 1983009808
        %v2964 = vunpack.c.0.s8 %v2963
        %v2965 = vlaneseq
        %v2966 = vshrl.u32 %v2965, 7
        %v2967 = vsub.s32 %v2964, %v2966
        %v2968 = vrot.slane %v2954, %v2967
        %v2969 = vcombine.low %v2961, %v2968
        %v2970 = vcombine.low %v2663, %v2667
        %v2971 = vcombine.low %v2671, %v2675
        %v2973 = vunpack.c.l.s4 1983009808
        %v2974 = vunpack.c.0.s8 %v2973
        %v2975 = vlaneseq
        %v2976 = vshrl.u32 %v2975, 7
        %v2977 = vsub.s32 %v2974, %v2976
        %v2978 = vrot.slane %v2970, %v2977
        %v2980 = vunpack.c.l.s4 1983009808
        %v2981 = vunpack.c.0.s8 %v2980
        %v2982 = vlaneseq
        %v2983 = vshrl.u32 %v2982, 7
        %v2984 = vsub.s32 %v2981, %v2983
        %v2985 = vrot.slane %v2971, %v2984
        %v2986 = vcombine.low %v2978, %v2985
        %v2987 = vcombine.low %v2679, %v2683
        %v2988 = vcombine.low %v2687, %v2691
        %v2990 = vunpack.c.l.s4 1983009808
        %v2991 = vunpack.c.0.s8 %v2990
        %v2992 = vlaneseq
        %v2993 = vshrl.u32 %v2992, 7
        %v2994 = vsub.s32 %v2991, %v2993
        %v2995 = vrot.slane %v2987, %v2994
        %v2997 = vunpack.c.l.s4 1983009808
        %v2998 = vunpack.c.0.s8 %v2997
        %v2999 = vlaneseq
        %v3000 = vshrl.u32 %v2999, 7
        %v3001 = vsub.s32 %v2998, %v3000
        %v3002 = vrot.slane %v2988, %v3001
        %v3003 = vcombine.low %v2995, %v3002
        %v3004 = vcombine.low %v2703, %v2707
        %v3005 = vcombine.low %v2711, %v2715
        %v3007 = vunpack.c.l.s4 1983009808
        %v3008 = vunpack.c.0.s8 %v3007
        %v3009 = vlaneseq
        %v3010 = vshrl.u32 %v3009, 7
        %v3011 = vsub.s32 %v3008, %v3010
        %v3012 = vrot.slane %v3004, %v3011
        %v3014 = vunpack.c.l.s4 1983009808
        %v3015 = vunpack.c.0.s8 %v3014
        %v3016 = vlaneseq
        %v3017 = vshrl.u32 %v3016, 7
        %v3018 = vsub.s32 %v3015, %v3017
        %v3019 = vrot.slane %v3005, %v3018
        %v3020 = vcombine.low %v3012, %v3019
        %v3021 = vcombine.low %v2719, %v2723
        %v3022 = vcombine.low %v2727, %v2731
        %v3024 = vunpack.c.l.s4 1983009808
        %v3025 = vunpack.c.0.s8 %v3024
        %v3026 = vlaneseq
        %v3027 = vshrl.u32 %v3026, 7
        %v3028 = vsub.s32 %v3025, %v3027
        %v3029 = vrot.slane %v3021, %v3028
        %v3031 = vunpack.c.l.s4 1983009808
        %v3032 = vunpack.c.0.s8 %v3031
        %v3033 = vlaneseq
        %v3034 = vshrl.u32 %v3033, 7
        %v3035 = vsub.s32 %v3032, %v3034
        %v3036 = vrot.slane %v3022, %v3035
        %v3037 = vcombine.low %v3029, %v3036
        %v3038 = vcombine.low %v2743, %v2747
        %v3039 = vcombine.low %v2751, %v2755
        %v3041 = vunpack.c.l.s4 1983009808
        %v3042 = vunpack.c.0.s8 %v3041
        %v3043 = vlaneseq
        %v3044 = vshrl.u32 %v3043, 7
        %v3045 = vsub.s32 %v3042, %v3044
        %v3046 = vrot.slane %v3038, %v3045
        %v3048 = vunpack.c.l.s4 1983009808
        %v3049 = vunpack.c.0.s8 %v3048
        %v3050 = vlaneseq
        %v3051 = vshrl.u32 %v3050, 7
        %v3052 = vsub.s32 %v3049, %v3051
        %v3053 = vrot.slane %v3039, %v3052
        %v3054 = vcombine.low %v3046, %v3053
        %v3055 = vcombine.low %v2759, %v2763
        %v3056 = vcombine.low %v2767, %v2771
        %v3058 = vunpack.c.l.s4 1983009808
        %v3059 = vunpack.c.0.s8 %v3058
        %v3060 = vlaneseq
        %v3061 = vshrl.u32 %v3060, 7
        %v3062 = vsub.s32 %v3059, %v3061
        %v3063 = vrot.slane %v3055, %v3062
        %v3065 = vunpack.c.l.s4 1983009808
        %v3066 = vunpack.c.0.s8 %v3065
        %v3067 = vlaneseq
        %v3068 = vshrl.u32 %v3067, 7
        %v3069 = vsub.s32 %v3066, %v3068
        %v3070 = vrot.slane %v3056, %v3069
        %v3071 = vcombine.low %v3063, %v3070
        %v3080 = vmul.f32 %v351, %v2952
        %v3081 = vmul.f32 %v352, %v2969
        %v3082 = vmul.f32 %v351, %v2986
        %v3083 = vmul.f32 %v352, %v3003
        %v3084 = vmul.f32 %v351, %v3020
        %v3085 = vmul.f32 %v352, %v3037
        %v3086 = vmul.f32 %v351, %v3054
        %v3087 = vmul.f32 %v352, %v3071
        %v3088 = vadd.f32 %v2928, %v3080
        %v3089 = vadd.f32 %v2929, %v3081
        %v3090 = vadd.f32 %v2930, %v3082
        %v3091 = vadd.f32 %v2931, %v3083
        %v3092 = vadd.f32 %v2932, %v3084
        %v3093 = vadd.f32 %v2933, %v3085
        %v3094 = vadd.f32 %v2934, %v3086
        %v3095 = vadd.f32 %v2935, %v3087
        %v3096 = vcombine.low %v2791, %v2801
        %v3097 = vcombine.low %v2651, %v2655
        %v3099 = vunpack.c.l.s4 1983009808
        %v3100 = vunpack.c.0.s8 %v3099
        %v3101 = vlaneseq
        %v3102 = vshrl.u32 %v3101, 7
        %v3103 = vsub.s32 %v3100, %v3102
        %v3104 = vrot.slane %v3097, %v3103
        %v3105 = vcombine.low %v2808, %v3104
        %v3106 = vcombine.low %v2825, %v2835
        %v3107 = vcombine.low %v2691, %v2695
        %v3109 = vunpack.c.l.s4 1983009808
        %v3110 = vunpack.c.0.s8 %v3109
        %v3111 = vlaneseq
        %v3112 = vshrl.u32 %v3111, 7
        %v3113 = vsub.s32 %v3110, %v3112
        %v3114 = vrot.slane %v3107, %v3113
        %v3115 = vcombine.low %v2842, %v3114
        %v3116 = vcombine.low %v2859, %v2869
        %v3117 = vcombine.low %v2731, %v2735
        %v3119 = vunpack.c.l.s4 1983009808
        %v3120 = vunpack.c.0.s8 %v3119
        %v3121 = vlaneseq
        %v3122 = vshrl.u32 %v3121, 7
        %v3123 = vsub.s32 %v3120, %v3122
        %v3124 = vrot.slane %v3117, %v3123
        %v3125 = vcombine.low %v2876, %v3124
        %v3126 = vcombine.low %v2893, %v2903
        %v3127 = vcombine.low %v2771, %v2775
        %v3129 = vunpack.c.l.s4 1983009808
        %v3130 = vunpack.c.0.s8 %v3129
        %v3131 = vlaneseq
        %v3132 = vshrl.u32 %v3131, 7
        %v3133 = vsub.s32 %v3130, %v3132
        %v3134 = vrot.slane %v3127, %v3133
        %v3135 = vcombine.low %v2910, %v3134
        %v3144 = vmul.f32 %v357, %v3096
        %v3145 = vmul.f32 %v358, %v3105
        %v3146 = vmul.f32 %v357, %v3106
        %v3147 = vmul.f32 %v358, %v3115
        %v3148 = vmul.f32 %v357, %v3116
        %v3149 = vmul.f32 %v358, %v3125
        %v3150 = vmul.f32 %v357, %v3126
        %v3151 = vmul.f32 %v358, %v3135
        %v3152 = vadd.f32 %v3088, %v3144
        %v3153 = vadd.f32 %v3089, %v3145
        %v3154 = vadd.f32 %v3090, %v3146
        %v3155 = vadd.f32 %v3091, %v3147
        %v3156 = vadd.f32 %v3092, %v3148
        %v3157 = vadd.f32 %v3093, %v3149
        %v3158 = vadd.f32 %v3094, %v3150
        %v3159 = vadd.f32 %v3095, %v3151
        %vm3160 = vcmask 130048
        %3161 = vst.msk [vmem:[%s217] sm:$0xff] %vm3160, %v3152
        %3162 = vst.msk [vmem:[%s217 + $0x8] sm:$0xff] %vm3160, %v3153
        %3163 = vst.msk [vmem:[%s217 + $0x10] sm:$0xff] %vm3160, %v3154
        %3164 = vst.msk [vmem:[%s217 + $0x18] sm:$0xff] %vm3160, %v3155
        %3165 = vst.msk [vmem:[%s217 + $0x20] sm:$0xff] %vm3160, %v3156
        %3166 = vst.msk [vmem:[%s217 + $0x28] sm:$0xff] %vm3160, %v3157
        %3167 = vst.msk [vmem:[%s217 + $0x30] sm:$0xff] %vm3160, %v3158
        %3168 = vst.msk [vmem:[%s217 + $0x38] sm:$0xff] %vm3160, %v3159
        %s3169 = sand.u32 %s108, 1
        %s3170 = scalar_lea.sflag [#allocation4], %s3169
        %s3171 = sand.u32 %s108, 1
        %s3172 = smul.addr %s3171, 64
        %s3173 = scalar_lea.vmem [#allocation5], %s3172
        // Predicated region
        $region33: #{tpu_custom_call.1} parent=27 // pred_check
          %p3174 = pneg %p118
        $region34: #{tpu_custom_call.1} parent=27 // pred_check_branch
          %3176 = sbr.rel (%p3174) target = $region36
        $region35: #{tpu_custom_call.1} parent=27 // pred_region
          %s3177 = smul.u32 2, %s26
          %s3179 = ssub.s32 1024, 1024
          %3180 = vsyncadd %s3170, %s3179
          %s3181 = smul.addr %s25, 8
          %s3182 = sadd.s32 %s3177, %s3181
          %s3183 = smul.addr %s24, 16
          %s3184 = sadd.s32 %s3182, %s3183
          %s3185 = smul.addr %s3184, 128
          %s3186 = scalar_lea.hbm %s2, %s3185
          %s3187 = sshll.u32 %s3173, 4
          %s3188 = int_to_ptr.vmem [resolvable:$true] %s3187
          %3193 = dma.vmem_to_hbm [thread:$0]  %s3188, 1024, %s3186, %s3170, 128, 128, 8
        $region36: #{tpu_custom_call.1} parent=27 // pred_fallthru
          _
      $region28: #{tpu_custom_call.1} parent=5 // pred_fallthru
        _
      %p3194 = scmp.le.s32.totalorder 2, %s14
      // Predicated region
      $region37: #{tpu_custom_call.1} parent=5 // pred_check
        %p3195 = pneg %p3194
      $region38: #{tpu_custom_call.1} parent=5 // pred_check_branch
        %3197 = sbr.rel (%p3195) target = $region40
      $region39: #{tpu_custom_call.1} parent=5 // pred_region
        %s3198 = ssub.s32 %s14, 2
        // Predicated region
        $region41: #{tpu_custom_call.1} parent=39 // pred_check
          %p3199 = pneg %p124
        $region42: #{tpu_custom_call.1} parent=39 // pred_check_branch
          %3201 = sbr.rel (%p3199) target = $region44
        $region43: #{tpu_custom_call.1} parent=39 // pred_region
          %s3202 = sand.u32 %s109, 1
          %s3203 = scalar_lea.sflag [#allocation4], %s3202
          %s3204 = sand.u32 %s109, 1
          %s3205 = smul.addr %s3204, 64
          %s3206 = scalar_lea.vmem [#allocation5], %s3205
          %3207 = dma.done %s3203, 1024
        $region44: #{tpu_custom_call.1} parent=39 // pred_fallthru
          _
      $region40: #{tpu_custom_call.1} parent=5 // pred_fallthru
        _
    $region6: #{tpu_custom_call.1} parent=1 // loop_footer
      %s18 = sadd.s32 1, %s14
    $region7: #{tpu_custom_call.1} parent=1 // loop_footer_branch
      %13 = sbr.rel target = $region3
    $region8: #{tpu_custom_call.1} parent=1 // loop_exit
      _
    %3208 = vsyncpa [#allocation3], 1
    %s3209 = scalar_lea.sflag [#allocation3], 1
    %3210 = vsyncpa %s3209, 1
    %3211 = vsyncpa [#allocation4], 1
    %s3212 = scalar_lea.sflag [#allocation4], 1
    %3213 = vsyncpa %s3212, 1

</llo_original>
